<compile_context>
chip_gen: v6e
topology: v6e:2x2x1
jax: 0.10.0
libtpu: 0.0.40
codegen_flags: <defaults>
</compile_context>

<pallas_src>
import math
from functools import partial

import jax
import jax.numpy as jnp
from jax.experimental import pallas as pl
from jax.experimental.pallas import tpu as pltpu


def _round_up(x, m):
    return ((x + m - 1) // m) * m


def _pick_tile(n, candidates, prefer_multi=False):
    """Largest candidate dividing n; optionally prefer a tile giving >=2 tiles."""
    divisors = [c for c in candidates if n >= c and n % c == 0]
    if not divisors:
        return n  # unreachable once N is padded to a multiple of 128
    if prefer_multi:
        for c in divisors:
            if n // c >= 2:
                return c
    return divisors[0]


# ----------------------------------------------------------------------------
# Pass 1: fused f32 -> bf16 downcast + out-degree norm.  Single read of adj.
#   grid = (col-tile k [parallel], row-tile m [arbitrary, reduction])
#   adj_lo[m, k]   = bf16(adj[m, k])                       (written every step)
#   norm_out[0, k] = clamp(sum_rows adj[:, k], 1)^(-1/2)   (resident accumulator)
# ----------------------------------------------------------------------------
def prep_kernel(adj_ref, adj_lo_ref, norm_ref):
    m = pl.program_id(1)

    @pl.when(m == 0)
    def _():
        norm_ref[...] = jnp.zeros_like(norm_ref)

    a = adj_ref[...]                                   # (tm1, tk1) f32
    adj_lo_ref[...] = a.astype(adj_lo_ref.dtype)       # bf16 copy for pass 2
    norm_ref[...] += jnp.sum(a, axis=0, keepdims=True)

    @pl.when(m == pl.num_programs(1) - 1)
    def _():
        norm_ref[...] = jax.lax.rsqrt(jnp.maximum(norm_ref[...], 1.0))


# ----------------------------------------------------------------------------
# Pass 2: copy_src + sum aggregation + in-degree + right norm + bias.
#   grid = (row-tile m [parallel], src/K-tile k [arbitrary, reduction])
#   per (m, k):  out_mk += adj_bf16(m,k) @ H_bf16(k)     (f32 accumulation)
#   H has a ones column at index m_out  ->  out[:, m_out] == in-degree.
#   finalize (k == last):  out = out * clamp(deg,1)^(-1/2) + bias_pad
# ----------------------------------------------------------------------------
def agg_kernel(adj_ref, h_ref, bias_ref, out_ref, *, m_out):
    k = pl.program_id(1)

    @pl.when(k == 0)
    def _():
        out_ref[...] = jnp.zeros_like(out_ref)

    out_ref[...] += jnp.dot(adj_ref[...], h_ref[...],
                            preferred_element_type=jnp.float32)

    @pl.when(k == pl.num_programs(1) - 1)
    def _():
        acc = out_ref[...]
        deg = acc[:, m_out:m_out + 1]                  # ones-column == in-degree
        norm_in = jax.lax.rsqrt(jnp.maximum(deg, 1.0))
        out_ref[...] = acc * norm_in + bias_ref[...]


# ----------------------------------------------------------------------------
# Wrapper: slotGCNConv.forward (norm='both', aggregator=None, slot_trans=None;
#          st_m = identity for semantic_trans='False', softmax(...) otherwise).
# ----------------------------------------------------------------------------
def slot_gcn_conv_forward(adj, feat, weight, bias, st_m):
    N = adj.shape[0]
    T, Fin, Fout = weight.shape
    K_feat = T * Fin
    M_out = T * Fout
    M_pad = _round_up(M_out + 1, 128)      # +1 for the ones (in-degree) column

    # Pad N to a multiple of 128: keeps the tiled/pipelined path for any N.
    # Padded nodes have zero rows/cols -> degree 0 -> clamped to 1; padded rows
    # are sliced off at the end.
    Np = _round_up(N, 128)
    if Np != N:
        adj = jnp.pad(adj, ((0, Np - N), (0, Np - N)))
        feat = jnp.pad(feat, ((0, Np - N), (0, 0)))

    # --- pass 1: fused downcast + out-degree norm (one adj read) -------------
    tm1 = _pick_tile(Np, (512, 256, 128))
    tk1 = _pick_tile(Np, (1024, 512, 256, 128))
    adj_lo, norm_out = pl.pallas_call(
        prep_kernel,
        out_shape=(jax.ShapeDtypeStruct((Np, Np), jnp.bfloat16),
                   jax.ShapeDtypeStruct((1, Np), jnp.float32)),
        grid=(Np // tk1, Np // tm1),
        in_specs=[pl.BlockSpec((tm1, tk1), lambda k, m: (m, k))],
        out_specs=(pl.BlockSpec((tm1, tk1), lambda k, m: (m, k)),
                   pl.BlockSpec((1, tk1), lambda k, m: (0, k))),
        compiler_params=pltpu.CompilerParams(
            dimension_semantics=("parallel", "arbitrary"),
            vmem_limit_bytes=64 * 1024 * 1024),
    )(adj)

    # --- tiny XLA precompute: H = (feat * norm_out) @ Wc, ones col, bf16 -----
    # Wc[s*Fin+i, t*Fout+o] = st_m[t, s] * weight[t, i, o]
    wc = jnp.einsum("ts,tio->sito", st_m, weight).reshape(K_feat, M_out)
    h = jnp.dot(feat * norm_out.reshape(Np, 1), wc)            # (Np, M_out) f32
    h_pad = jnp.concatenate(
        [h,
         jnp.ones((Np, 1), jnp.float32),                       # in-degree column
         jnp.zeros((Np, M_pad - M_out - 1), jnp.float32)],
        axis=1).astype(jnp.bfloat16)                           # (Np, M_pad) bf16
    bias_pad = jnp.concatenate(
        [bias.astype(jnp.float32),
         jnp.zeros((M_pad - M_out,), jnp.float32)])[None, :]   # (1, M_pad)

    # --- pass 2: aggregation + right norm + bias ------------------------------
    tm = _pick_tile(Np, (1024, 512, 256, 128), prefer_multi=True)
    tk = _pick_tile(Np, (2048, 1024, 512, 256, 128))
    out = pl.pallas_call(
        partial(agg_kernel, m_out=M_out),
        out_shape=jax.ShapeDtypeStruct((Np, M_pad), jnp.float32),
        grid=(Np // tm, Np // tk),
        in_specs=[
            pl.BlockSpec((tm, tk), lambda m, k: (m, k)),       # adj tile (bf16)
            pl.BlockSpec((tk, M_pad), lambda m, k: (k, 0)),    # H tile (bf16)
            pl.BlockSpec((1, M_pad), lambda m, k: (0, 0)),     # bias (resident)
        ],
        out_specs=pl.BlockSpec((tm, M_pad), lambda m, k: (m, 0)),
        compiler_params=pltpu.CompilerParams(
            dimension_semantics=("parallel", "arbitrary"),
            vmem_limit_bytes=64 * 1024 * 1024),
    )(adj_lo, h_pad, bias_pad)

    # activation is None in this configuration
    return out[:N, :M_out]


# ----------------------------------------------------------------------------
# Pure-JAX reference (mirrors the PyTorch forward) for a correctness check.
# ----------------------------------------------------------------------------
def reference_forward(adj, feat, weight, bias, st_m):
    N = adj.shape[0]
    T, Fin, Fout = weight.shape
    norm_out = jnp.maximum(jnp.sum(adj, axis=0), 1.0) ** -0.5
    norm_in = jnp.maximum(jnp.sum(adj, axis=1), 1.0) ** -0.5
    fs = feat * norm_out[:, None]                                     # left norm
    fs = jnp.einsum("ts,nsf->ntf", st_m, fs.reshape(N, T, Fin))       # semantic transition
    fs = jnp.einsum("ntf,tfo->nto", fs, weight).reshape(N, T * Fout)  # slot bmm
    rst = adj @ fs                                                    # copy_src + sum
    rst = rst * norm_in[:, None]                                      # right norm
    rst = rst + bias                                                  # bias
    return rst


if __name__ == "__main__":
    # N chosen so the tiled path (grid 3x3 of 128-tiles) is actually exercised.
    N, T, Fin, Fout = 384, 4, 32, 16

    key = jax.random.PRNGKey(0)
    k_adj, k_feat, k_w, k_b, k_stm = jax.random.split(key, 5)

    # deterministic graph with self-loops (no 0-in-degree nodes, as DGL requires)
    adj = (jax.random.uniform(k_adj, (N, N)) < 0.05).astype(jnp.float32)
    adj = jnp.maximum(adj, jnp.eye(N, dtype=jnp.float32))             # adj[dst, src]

    # node features: [N, num_ntype * in_feats]
    feat = jax.random.normal(k_feat, (N, T * Fin), dtype=jnp.float32)

    # parameters
    bound_w = math.sqrt(6.0 / (Fin + Fout))
    weight = jax.random.uniform(k_w, (T, Fin, Fout), jnp.float32, -bound_w, bound_w)
    bias = 0.1 * jax.random.normal(k_b, (T * Fout,), dtype=jnp.float32)

    fwd = jax.jit(slot_gcn_conv_forward)

    # semantic_trans='False' -> identity transition matrix
    st_eye = jnp.eye(T, dtype=jnp.float32)
    out1 = jax.block_until_ready(fwd(adj, feat, weight, bias, st_eye))
    ref1 = reference_forward(adj, feat, weight, bias, st_eye)
    assert out1.shape == (N, T * Fout)
    assert jnp.allclose(out1, ref1, atol=2e-2, rtol=2e-2), \
        "Pallas output mismatch vs reference (semantic_trans=False)"

    # semantic_trans='True' (row softmax of the learned matrix) just swaps st_m
    st_soft = jax.nn.softmax(jax.random.normal(k_stm, (T, T), dtype=jnp.float32), axis=1)
    out2 = jax.block_until_ready(fwd(adj, feat, weight, bias, st_soft))
    ref2 = reference_forward(adj, feat, weight, bias, st_soft)
    assert jnp.allclose(out2, ref2, atol=2e-2, rtol=2e-2), \
        "Pallas output mismatch vs reference (semantic_trans=True)"

    print("KERNEL_OK")
</pallas_src>

<mosaic_0001>
module attributes {stable_mosaic.version = 11 : i64} {
  func.func @prep_kernel(%arg0: i32, %arg1: i32, %arg2: memref<128x128xf32, #tpu.memory_space<vmem>>, %arg3: memref<128x128xbf16, #tpu.memory_space<vmem>>, %arg4: memref<1x128xf32, #tpu.memory_space<vmem>>) attributes {dimension_semantics = [#tpu.dimension_semantics<parallel>, #tpu.dimension_semantics<arbitrary>], iteration_bounds = array<i64: 3, 3>, scalar_prefetch = 0 : i64, scratch_operands = 0 : i64, tpu.core_type = #tpu.core_type<tc>, window_params = [{transform_indices = @transform_0, window_bounds = array<i64: 128, 128>}, {transform_indices = @transform_1, window_bounds = array<i64: 128, 128>}, {transform_indices = @transform_2, window_bounds = array<i64: 1, 128>}]} {
    %c0_i32 = arith.constant 0 : i32
    %0 = arith.cmpi eq, %arg1, %c0_i32 : i32
    %1 = arith.extui %0 : i1 to i32
    %c0_i32_0 = arith.constant 0 : i32
    %2 = arith.cmpi ne, %1, %c0_i32_0 : i32
    scf.if %2 {
      %cst_9 = arith.constant 0.000000e+00 : f32
      %14 = vector.broadcast %cst_9 : f32 to vector<1x128xf32>
      %c0_10 = arith.constant 0 : index
      %c0_11 = arith.constant 0 : index
      %15 = vector.load %arg4[%c0_10, %c0_11] : memref<1x128xf32, #tpu.memory_space<vmem>>, vector<1x128xf32>
      tpu.vector_store %arg4[%c0_10, %c0_11], %14 {strides = array<i32>} : memref<1x128xf32, #tpu.memory_space<vmem>>, vector<1x128xf32>,
    } else {
    }
    %c0 = arith.constant 0 : index
    %c0_1 = arith.constant 0 : index
    %3 = vector.load %arg2[%c0, %c0_1] : memref<128x128xf32, #tpu.memory_space<vmem>>, vector<128x128xf32>
    %4 = arith.truncf %3 : vector<128x128xf32> to vector<128x128xbf16>
    %c0_2 = arith.constant 0 : index
    %c0_3 = arith.constant 0 : index
    %5 = vector.load %arg3[%c0_2, %c0_3] : memref<128x128xbf16, #tpu.memory_space<vmem>>, vector<128x128xbf16>
    tpu.vector_store %arg3[%c0_2, %c0_3], %4 {strides = array<i32>} : memref<128x128xbf16, #tpu.memory_space<vmem>>, vector<128x128xbf16>,
    %c0_4 = arith.constant 0 : index
    %c0_5 = arith.constant 0 : index
    %6 = vector.load %arg4[%c0_4, %c0_5] : memref<1x128xf32, #tpu.memory_space<vmem>>, vector<1x128xf32>
    %cst = arith.constant dense<0.000000e+00> : vector<128xf32>
    %7 = vector.multi_reduction <add>, %3, %cst [0] : vector<128x128xf32> to vector<128xf32>
    %8 = vector.shape_cast %7 : vector<128xf32> to vector<1x128xf32>
    %9 = arith.addf %6, %8 : vector<1x128xf32>
    %c0_6 = arith.constant 0 : index
    %c0_7 = arith.constant 0 : index
    %10 = vector.load %arg4[%c0_6, %c0_7] : memref<1x128xf32, #tpu.memory_space<vmem>>, vector<1x128xf32>
    tpu.vector_store %arg4[%c0_6, %c0_7], %9 {strides = array<i32>} : memref<1x128xf32, #tpu.memory_space<vmem>>, vector<1x128xf32>,
    %c2_i32 = arith.constant 2 : i32
    %11 = arith.cmpi eq, %arg1, %c2_i32 : i32
    %12 = arith.extui %11 : i1 to i32
    %c0_i32_8 = arith.constant 0 : i32
    %13 = arith.cmpi ne, %12, %c0_i32_8 : i32
    scf.if %13 {
      %c0_9 = arith.constant 0 : index
      %c0_10 = arith.constant 0 : index
      %14 = vector.load %arg4[%c0_9, %c0_10] : memref<1x128xf32, #tpu.memory_space<vmem>>, vector<1x128xf32>
      %cst_11 = arith.constant 1.000000e+00 : f32
      %15 = vector.broadcast %cst_11 : f32 to vector<1x128xf32>
      %16 = arith.maximumf %14, %15 : vector<1x128xf32>
      %17 = math.rsqrt %16 : vector<1x128xf32>
      %c0_12 = arith.constant 0 : index
      %c0_13 = arith.constant 0 : index
      %18 = vector.load %arg4[%c0_12, %c0_13] : memref<1x128xf32, #tpu.memory_space<vmem>>, vector<1x128xf32>
      tpu.vector_store %arg4[%c0_12, %c0_13], %17 {strides = array<i32>} : memref<1x128xf32, #tpu.memory_space<vmem>>, vector<1x128xf32>,
    } else {
    }
    return
  }
  func.func @transform_0(%arg0: i32, %arg1: i32) -> (i32, i32) {
    %c0_i32 = arith.constant 0 : i32
    return %arg1, %arg0 : i32, i32
  }
  func.func @transform_1(%arg0: i32, %arg1: i32) -> (i32, i32) {
    %c0_i32 = arith.constant 0 : i32
    return %arg1, %arg0 : i32, i32
  }
  func.func @transform_2(%arg0: i32, %arg1: i32) -> (i32, i32) {
    %c0_i32 = arith.constant 0 : i32
    %c0_i32_0 = arith.constant 0 : i32
    return %c0_i32, %arg0 : i32, i32
  }
}

module attributes {stable_mosaic.version = 11 : i64} {
  func.func @agg_kernel(%arg0: i32, %arg1: i32, %arg2: memref<128x128xbf16, #tpu.memory_space<vmem>>, %arg3: memref<128x128xbf16, #tpu.memory_space<vmem>>, %arg4: memref<1x128xf32, #tpu.memory_space<vmem>>, %arg5: memref<128x128xf32, #tpu.memory_space<vmem>>) attributes {dimension_semantics = [#tpu.dimension_semantics<parallel>, #tpu.dimension_semantics<arbitrary>], iteration_bounds = array<i64: 3, 3>, scalar_prefetch = 0 : i64, scratch_operands = 0 : i64, tpu.core_type = #tpu.core_type<tc>, window_params = [{transform_indices = @transform_0, window_bounds = array<i64: 128, 128>}, {transform_indices = @transform_1, window_bounds = array<i64: 128, 128>}, {pipeline_mode = #tpu.pipeline_mode<synchronous>, transform_indices = @transform_2, window_bounds = array<i64: 1, 128>}, {transform_indices = @transform_3, window_bounds = array<i64: 128, 128>}]} {
    %c0_i32 = arith.constant 0 : i32
    %0 = arith.cmpi eq, %arg1, %c0_i32 : i32
    %1 = arith.extui %0 : i1 to i32
    %c0_i32_0 = arith.constant 0 : i32
    %2 = arith.cmpi ne, %1, %c0_i32_0 : i32
    scf.if %2 {
      %cst_9 = arith.constant 0.000000e+00 : f32
      %12 = vector.broadcast %cst_9 : f32 to vector<128x128xf32>
      %c0_10 = arith.constant 0 : index
      %c0_11 = arith.constant 0 : index
      %13 = vector.load %arg5[%c0_10, %c0_11] : memref<128x128xf32, #tpu.memory_space<vmem>>, vector<128x128xf32>
      tpu.vector_store %arg5[%c0_10, %c0_11], %12 {strides = array<i32>} : memref<128x128xf32, #tpu.memory_space<vmem>>, vector<128x128xf32>,
    } else {
    }
    %c0 = arith.constant 0 : index
    %c0_1 = arith.constant 0 : index
    %3 = vector.load %arg5[%c0, %c0_1] : memref<128x128xf32, #tpu.memory_space<vmem>>, vector<128x128xf32>
    %c0_2 = arith.constant 0 : index
    %c0_3 = arith.constant 0 : index
    %4 = vector.load %arg2[%c0_2, %c0_3] : memref<128x128xbf16, #tpu.memory_space<vmem>>, vector<128x128xbf16>
    %c0_4 = arith.constant 0 : index
    %c0_5 = arith.constant 0 : index
    %5 = vector.load %arg3[%c0_4, %c0_5] : memref<128x128xbf16, #tpu.memory_space<vmem>>, vector<128x128xbf16>
    %cst = arith.constant dense<0.000000e+00> : vector<128x128xf32>
    %6 = tpu.matmul %4, %5, %cst {dimension_numbers = #tpu.dot_dimension_numbers<[1], [0], [0], [1], [0, 0, 1, 1], [], []>} : vector<128x128xbf16>, vector<128x128xbf16>, vector<128x128xf32> -> vector<128x128xf32>
    %7 = arith.addf %3, %6 : vector<128x128xf32>
    %c0_6 = arith.constant 0 : index
    %c0_7 = arith.constant 0 : index
    %8 = vector.load %arg5[%c0_6, %c0_7] : memref<128x128xf32, #tpu.memory_space<vmem>>, vector<128x128xf32>
    tpu.vector_store %arg5[%c0_6, %c0_7], %7 {strides = array<i32>} : memref<128x128xf32, #tpu.memory_space<vmem>>, vector<128x128xf32>,
    %c2_i32 = arith.constant 2 : i32
    %9 = arith.cmpi eq, %arg1, %c2_i32 : i32
    %10 = arith.extui %9 : i1 to i32
    %c0_i32_8 = arith.constant 0 : i32
    %11 = arith.cmpi ne, %10, %c0_i32_8 : i32
    scf.if %11 {
      %c0_9 = arith.constant 0 : index
      %c0_10 = arith.constant 0 : index
      %12 = vector.load %arg5[%c0_9, %c0_10] : memref<128x128xf32, #tpu.memory_space<vmem>>, vector<128x128xf32>
      %13 = vector.extract_strided_slice %12 {offsets = [0, 64], sizes = [128, 1], strides = [1, 1]} : vector<128x128xf32> to vector<128x1xf32>
      %cst_11 = arith.constant 1.000000e+00 : f32
      %14 = vector.broadcast %cst_11 : f32 to vector<128x1xf32>
      %15 = arith.maximumf %13, %14 : vector<128x1xf32>
      %16 = math.rsqrt %15 : vector<128x1xf32>
      %17 = vector.broadcast %16 : vector<128x1xf32> to vector<128x128xf32>
      %18 = arith.mulf %12, %17 : vector<128x128xf32>
      %c0_12 = arith.constant 0 : index
      %c0_13 = arith.constant 0 : index
      %19 = vector.load %arg4[%c0_12, %c0_13] : memref<1x128xf32, #tpu.memory_space<vmem>>, vector<1x128xf32>
      %20 = vector.broadcast %19 : vector<1x128xf32> to vector<128x128xf32>
      %21 = arith.addf %18, %20 : vector<128x128xf32>
      %c0_14 = arith.constant 0 : index
      %c0_15 = arith.constant 0 : index
      %22 = vector.load %arg5[%c0_14, %c0_15] : memref<128x128xf32, #tpu.memory_space<vmem>>, vector<128x128xf32>
      tpu.vector_store %arg5[%c0_14, %c0_15], %21 {strides = array<i32>} : memref<128x128xf32, #tpu.memory_space<vmem>>, vector<128x128xf32>,
    } else {
    }
    return
  }
  func.func @transform_0(%arg0: i32, %arg1: i32) -> (i32, i32) {
    %c0_i32 = arith.constant 0 : i32
    return %arg0, %arg1 : i32, i32
  }
  func.func @transform_1(%arg0: i32, %arg1: i32) -> (i32, i32) {
    %c0_i32 = arith.constant 0 : i32
    %c0_i32_0 = arith.constant 0 : i32
    return %arg1, %c0_i32 : i32, i32
  }
  func.func @transform_2(%arg0: i32, %arg1: i32) -> (i32, i32) {
    %c0_i32 = arith.constant 0 : i32
    %c0_i32_0 = arith.constant 0 : i32
    %c0_i32_1 = arith.constant 0 : i32
    return %c0_i32, %c0_i32_0 : i32, i32
  }
  func.func @transform_3(%arg0: i32, %arg1: i32) -> (i32, i32) {
    %c0_i32 = arith.constant 0 : i32
    %c0_i32_0 = arith.constant 0 : i32
    return %arg0, %c0_i32 : i32, i32
  }
}

</mosaic_0001>

<llo_original>
// kernel: slot_gcn_conv_forward.2
$region0: #{slot_gcn_conv_forward.2}
  #allocation0 [shape = 'u32[]', space=smem, size = 0x4, offset = 0x4, fixed_abs, tag = 'smem constant byte address 0x4 - core index']
  #allocation1 [shape = 'u32[144,128]{1,0:T(1,128)}', space=vmem, size = 0x12000, scoped, tag = 'internal scratch']
  %s0 = inlined_call_operand.hbm [shape: f32[384,384], index: 0, kind: input, shape index: {}]
  %s1 = inlined_call_operand.vmem [shape: bf16[384,384], index: 1, kind: output, shape index: {0}]
  %s2 = inlined_call_operand.vmem [shape: f32[1,384], index: 2, kind: output, shape index: {1}]
  %3 = xla_tuple %s1, %s2
  %s4 = sld [smem:[#allocation0]]
  $region94: #{slot_gcn_conv_forward.2} parent=0
    _
  %s6 = ssub.s32 1, %s4
  %s7 = scalar_select 0, %s6, %s4
  $region1: #{slot_gcn_conv_forward.2} parent=0
    #allocation2 [shape = 'u8[131072]{0}', space=vmem, size = 0x20000, scoped, tag = 'input window, operand 0']
    #allocation3 [shape = 's32[2]{0}', space=sflag, size = 0x8, scoped, tag = 'scoped memory for slot_gcn_conv_forward.2']
    #allocation4 [shape = 'u8[65536]{0}', space=vmem, size = 0x10000, scoped, tag = 'output window, operand 0']
    %8 = vsyncpa [#allocation3], 0
    %s9 = scalar_lea.sflag [#allocation3], 1
    %10 = vsyncpa %s9, 0
    loop: start=0, step=1, limit=11
    $region2: #{slot_gcn_conv_forward.2} parent=1 // loop_pre_header
      _
    $region3: #{slot_gcn_conv_forward.2} parent=1 // loop_header
      %s12 = sphi 0, %s16
      %p13 = scmp.ge.s32.totalorder %s12, 11
      %s19 = sphi 0, %s31
      %s20 = sphi 0, %s27
      %s21 = sphi 0, %s19
      %s22 = sphi 0, %s20
      %s23 = sphi 0, %s21
      %s24 = sphi 0, %s22
      %s36 = sphi 0, %s38
      %s39 = sphi 0, %s36
      %s40 = sphi 0, %s39
      %s56 = sphi 0, %s40
      %s64 = sphi 0, %s66
      %s67 = sphi 0, %s64
      %s68 = sphi 0, %s67
      %s84 = sphi 0, %s68
      %s90 = sphi 0, %s92
      %s93 = sphi 0, %s90
      %s94 = sphi 0, %s93
      %s110 = sphi 0, %s94
    $region4: #{slot_gcn_conv_forward.2} parent=1 // loop_header_branch
      %15 = sbr.rel (%p13) target = $region8
    $region5: #{slot_gcn_conv_forward.2} parent=1 // loop_body
      %s17 = ssub.s32 %s12, 1
      %s18 = ssub.s32 %s12, 2
      %s25 = sadd.s32 1, %s20
      %p26 = scmp.ge.s32.totalorder %s25, 3
      %s27 = scalar_select %p26, 0, %s25
      %s28 = sadd.s32 1, %s19
      %s29 = scalar_select %p26, %s28, %s19
      %p30 = scmp.ge.s32.totalorder %s29, 3
      %s31 = scalar_select %p30, 0, %s29
      %s32 = ssub.s32 %s20, %s27
      %s33 = ssub.s32 %s19, %s31
      %s34 = sor.u32 %s32, %s33
      %p35 = scmp.eq.s32.totalorder %s34, 0
      %s37 = sadd.s32 %s36, 1
      %s38 = scalar_select %p35, %s36, %s37
      %p41 = pneg %p35
      %p42 = scmp.eq.s32.totalorder %s12, 8
      %p43 = por %p41, %p42
      %p44 = scmp.ne.s32.totalorder %s36, %s39
      %p45 = scmp.eq.s32.totalorder %s12, 0
      %p46 = por %p44, %p45
      %p47 = scmp.ne.s32.totalorder %s36, %s39
      %p48 = scmp.eq.s32.totalorder %s17, 8
      %p49 = por %p47, %p48
      %p50 = scmp.ne.s32.totalorder %s39, %s40
      %p51 = scmp.eq.s32.totalorder %s17, 0
      %p52 = por %p50, %p51
      %p53 = scmp.ne.s32.totalorder %s39, %s40
      %p54 = scmp.eq.s32.totalorder %s18, 8
      %p55 = por %p53, %p54
      %p57 = scmp.ne.s32.totalorder %s40, %s56
      %p58 = scmp.eq.s32.totalorder %s18, 0
      %p59 = por %p57, %p58
      %s60 = ssub.s32 %s20, %s27
      %s61 = ssub.s32 %s19, %s31
      %s62 = sor.u32 %s60, %s61
      %p63 = scmp.eq.s32.totalorder %s62, 0
      %s65 = sadd.s32 %s64, 1
      %s66 = scalar_select %p63, %s64, %s65
      %p69 = pneg %p63
      %p70 = scmp.eq.s32.totalorder %s12, 8
      %p71 = por %p69, %p70
      %p72 = scmp.ne.s32.totalorder %s64, %s67
      %p73 = scmp.eq.s32.totalorder %s12, 0
      %p74 = por %p72, %p73
      %p75 = scmp.ne.s32.totalorder %s64, %s67
      %p76 = scmp.eq.s32.totalorder %s17, 8
      %p77 = por %p75, %p76
      %p78 = scmp.ne.s32.totalorder %s67, %s68
      %p79 = scmp.eq.s32.totalorder %s17, 0
      %p80 = por %p78, %p79
      %p81 = scmp.ne.s32.totalorder %s67, %s68
      %p82 = scmp.eq.s32.totalorder %s18, 8
      %p83 = por %p81, %p82
      %p85 = scmp.ne.s32.totalorder %s68, %s84
      %p86 = scmp.eq.s32.totalorder %s18, 0
      %p87 = por %p85, %p86
      %s88 = ssub.s32 %s19, %s31
      %p89 = scmp.eq.s32.totalorder %s88, 0
      %s91 = sadd.s32 %s90, 1
      %s92 = scalar_select %p89, %s90, %s91
      %p95 = pneg %p89
      %p96 = scmp.eq.s32.totalorder %s12, 8
      %p97 = por %p95, %p96
      %p98 = scmp.ne.s32.totalorder %s90, %s93
      %p99 = scmp.eq.s32.totalorder %s12, 0
      %p100 = por %p98, %p99
      %p101 = scmp.ne.s32.totalorder %s90, %s93
      %p102 = scmp.eq.s32.totalorder %s17, 8
      %p103 = por %p101, %p102
      %p104 = scmp.ne.s32.totalorder %s93, %s94
      %p105 = scmp.eq.s32.totalorder %s17, 0
      %p106 = por %p104, %p105
      %p107 = scmp.ne.s32.totalorder %s93, %s94
      %p108 = scmp.eq.s32.totalorder %s18, 8
      %p109 = por %p107, %p108
      %p111 = scmp.ne.s32.totalorder %s94, %s110
      %p112 = scmp.eq.s32.totalorder %s18, 0
      %p113 = por %p111, %p112
      %p114 = scmp.le.s32.totalorder 1, %s12
      %p115 = scmp.lt.s32.totalorder %s12, 10
      %p116 = pnand %p114, %p115
      %p117 = pneg %p116
      // Predicated region
      $region9: #{slot_gcn_conv_forward.2} parent=5 // pred_check
        _
      $region10: #{slot_gcn_conv_forward.2} parent=5 // pred_check_branch
        %119 = sbr.rel (%p116) target = $region12
      $region11: #{slot_gcn_conv_forward.2} parent=5 // pred_region
        %s120 = ssub.s32 %s12, 1
      $region12: #{slot_gcn_conv_forward.2} parent=5 // pred_fallthru
        _
      %p121 = scmp.lt.s32.totalorder %s12, 9
      // Predicated region
      $region13: #{slot_gcn_conv_forward.2} parent=5 // pred_check
        %p122 = pneg %p121
      $region14: #{slot_gcn_conv_forward.2} parent=5 // pred_check_branch
        %124 = sbr.rel (%p122) target = $region16
      $region15: #{slot_gcn_conv_forward.2} parent=5 // pred_region
        // Predicated region
        $region17: #{slot_gcn_conv_forward.2} parent=15 // pred_check
          %p125 = pneg %p46
        $region18: #{slot_gcn_conv_forward.2} parent=15 // pred_check_branch
          %127 = sbr.rel (%p125) target = $region20
        $region19: #{slot_gcn_conv_forward.2} parent=15 // pred_region
          %s128 = sand.u32 %s36, 1
          %s129 = scalar_lea.sflag [#allocation3], %s128
          %s130 = sand.u32 %s36, 1
          %s131 = smul.addr %s130, 128
          %s132 = scalar_lea.vmem [#allocation2], %s131
          %s133 = smul.u32 16, %s20
          %s135 = ssub.s32 2048, 2048
          %136 = vsyncadd %s129, %s135
          %s137 = smul.addr %s133, 3
          %s138 = sadd.s32 %s19, %s137
          %s139 = smul.addr %s138, 128
          %s140 = scalar_lea.hbm %s0, %s139
          %s141 = sshll.u32 %s132, 4
          %s142 = int_to_ptr.vmem [resolvable:$true] %s141
          %147 = dma.hbm_to_vmem [thread:$0]  %s140, 2048, %s142, %s129, 384, 128, 8
        $region20: #{slot_gcn_conv_forward.2} parent=15 // pred_fallthru
          _
      $region16: #{slot_gcn_conv_forward.2} parent=5 // pred_fallthru
        _
      %p148 = scmp.le.s32.totalorder 1, %s12
      %p149 = scmp.lt.s32.totalorder %s12, 10
      %p150 = pnand %p148, %p149
      %p151 = pneg %p150
      // Predicated region
      $region21: #{slot_gcn_conv_forward.2} parent=5 // pred_check
        _
      $region22: #{slot_gcn_conv_forward.2} parent=5 // pred_check_branch
        %153 = sbr.rel (%p150) target = $region24
      $region23: #{slot_gcn_conv_forward.2} parent=5 // pred_region
        %s154 = ssub.s32 %s12, 1
        %s155 = sand.u32 %s39, 1
        %s156 = scalar_lea.sflag [#allocation3], %s155
        %s157 = sand.u32 %s39, 1
        %s158 = smul.addr %s157, 128
        %s159 = scalar_lea.vmem [#allocation2], %s158
        // Predicated region
        $region25: #{slot_gcn_conv_forward.2} parent=23 // pred_check
          %p160 = pneg %p52
        $region26: #{slot_gcn_conv_forward.2} parent=23 // pred_check_branch
          %162 = sbr.rel (%p160) target = $region28
        $region27: #{slot_gcn_conv_forward.2} parent=23 // pred_region
          %163 = dma.done %s156, 2048
        $region28: #{slot_gcn_conv_forward.2} parent=23 // pred_fallthru
          _
        %s164 = sand.u32 %s39, 1
        %s165 = scalar_lea.sflag [#allocation3], %s164
        %s166 = sand.u32 %s39, 1
        %s167 = smul.addr %s166, 128
        %s168 = scalar_lea.vmem [#allocation2], %s167
        %p169 = pneg %p52
        %p170 = pneg %p49
        %p171 = pneg %p80
        %p172 = pneg %p77
        %s173 = sand.u32 %s67, 1
        %s174 = sand.u32 %s67, 1
        %s175 = smul.addr %s174, 64
        %s176 = scalar_lea.vmem [#allocation4], %s175
        %p177 = pneg %p106
        %p178 = pneg %p103
        %p179 = scmp.lt.s32.totalorder %s21, 2
        %s180 = scalar_select %p179, %s21, 2
        %s181 = scalar_lea.vmem %s2, %s180
        %s182 = smul.u32 16, %s22
        %s183 = smul.u32 16, %s22
        %p184 = scmp.lt.s32.totalorder %s21, 2
        %s185 = scalar_select %p184, %s21, 2
        %s186 = scalar_lea.vmem %s2, %s185
        %p187 = scmp.eq.s32.totalorder %s22, 0
        // Predicated region
        $region29: #{slot_gcn_conv_forward.2} parent=23 // pred_check
          %p188 = pneg %p187
        $region30: #{slot_gcn_conv_forward.2} parent=23 // pred_check_branch
          %190 = sbr.rel (%p188) target = $region32
        $region31: #{slot_gcn_conv_forward.2} parent=23 // pred_region
          %191 = vst [vmem:[%s186] sm:$0x1] 0.0
        $region32: #{slot_gcn_conv_forward.2} parent=23 // pred_fallthru
          _
        %v192 = vld [vmem:[%s159] sm:$0xff]
        %v193 = vld [vmem:[%s159 + $0x8] sm:$0xff]
        %v194 = vld [vmem:[%s159 + $0x10] sm:$0xff]
        %v195 = vld [vmem:[%s159 + $0x18] sm:$0xff]
        %v196 = vld [vmem:[%s159 + $0x20] sm:$0xff]
        %v197 = vld [vmem:[%s159 + $0x28] sm:$0xff]
        %v198 = vld [vmem:[%s159 + $0x30] sm:$0xff]
        %v199 = vld [vmem:[%s159 + $0x38] sm:$0xff]
        %v200 = vld [vmem:[%s159 + $0x40] sm:$0xff]
        %v201 = vld [vmem:[%s159 + $0x48] sm:$0xff]
        %v202 = vld [vmem:[%s159 + $0x50] sm:$0xff]
        %v203 = vld [vmem:[%s159 + $0x58] sm:$0xff]
        %v204 = vld [vmem:[%s159 + $0x60] sm:$0xff]
        %v205 = vld [vmem:[%s159 + $0x68] sm:$0xff]
        %v206 = vld [vmem:[%s159 + $0x70] sm:$0xff]
        %v207 = vld [vmem:[%s159 + $0x78] sm:$0xff]
        %v208 = vpack.c.bf16 %v193, %v192
        %v209 = vpack.c.bf16 %v195, %v194
        %v210 = vpack.c.bf16 %v197, %v196
        %v211 = vpack.c.bf16 %v199, %v198
        %v212 = vpack.c.bf16 %v201, %v200
        %v213 = vpack.c.bf16 %v203, %v202
        %v214 = vpack.c.bf16 %v205, %v204
        %v215 = vpack.c.bf16 %v207, %v206
        %v224 = vunpack.c.l.b16 %v208
        %v225 = vunpack.c.h.b16 %v208
        %v226 = vunpack.c.l.b16 %v209
        %v227 = vunpack.c.h.b16 %v209
        %v228 = vunpack.c.l.b16 %v210
        %v229 = vunpack.c.h.b16 %v210
        %v230 = vunpack.c.l.b16 %v211
        %v231 = vunpack.c.h.b16 %v211
        %v232 = vunpack.c.l.b16 %v212
        %v233 = vunpack.c.h.b16 %v212
        %v234 = vunpack.c.l.b16 %v213
        %v235 = vunpack.c.h.b16 %v213
        %v236 = vunpack.c.l.b16 %v214
        %v237 = vunpack.c.h.b16 %v214
        %v238 = vunpack.c.l.b16 %v215
        %v239 = vunpack.c.h.b16 %v215
        %v240 = vpack.c.b16 %v224, %v224
        %v241 = vpack.c.b16 %v225, %v225
        %v242 = vpack.c.b16 %v226, %v226
        %v243 = vpack.c.b16 %v227, %v227
        %v244 = vpack.c.b16 %v228, %v228
        %v245 = vpack.c.b16 %v229, %v229
        %v246 = vpack.c.b16 %v230, %v230
        %v247 = vpack.c.b16 %v231, %v231
        %v248 = vpack.c.b16 %v232, %v232
        %v249 = vpack.c.b16 %v233, %v233
        %v250 = vpack.c.b16 %v234, %v234
        %v251 = vpack.c.b16 %v235, %v235
        %v252 = vpack.c.b16 %v236, %v236
        %v253 = vpack.c.b16 %v237, %v237
        %v254 = vpack.c.b16 %v238, %v238
        %v255 = vpack.c.b16 %v239, %v239
        %272 = vst [vmem:[%s176] sm:$0xf] %v240
        %273 = vst [vmem:[%s176 + $0x4] sm:$0xf] %v241
        %274 = vst [vmem:[%s176 + $0x8] sm:$0xf] %v242
        %275 = vst [vmem:[%s176 + $0xc] sm:$0xf] %v243
        %276 = vst [vmem:[%s176 + $0x10] sm:$0xf] %v244
        %277 = vst [vmem:[%s176 + $0x14] sm:$0xf] %v245
        %278 = vst [vmem:[%s176 + $0x18] sm:$0xf] %v246
        %279 = vst [vmem:[%s176 + $0x1c] sm:$0xf] %v247
        %280 = vst [vmem:[%s176 + $0x20] sm:$0xf] %v248
        %281 = vst [vmem:[%s176 + $0x24] sm:$0xf] %v249
        %282 = vst [vmem:[%s176 + $0x28] sm:$0xf] %v250
        %283 = vst [vmem:[%s176 + $0x2c] sm:$0xf] %v251
        %284 = vst [vmem:[%s176 + $0x30] sm:$0xf] %v252
        %285 = vst [vmem:[%s176 + $0x34] sm:$0xf] %v253
        %286 = vst [vmem:[%s176 + $0x38] sm:$0xf] %v254
        %287 = vst [vmem:[%s176 + $0x3c] sm:$0xf] %v255
        %v288 = vld [vmem:[%s186] sm:$0x1]
        %v289 = vadd.f32 %v192, %v193
        %v290 = vadd.f32 %v289, %v194
        %v291 = vadd.f32 %v290, %v195
        %v292 = vadd.f32 %v291, %v196
        %v293 = vadd.f32 %v292, %v197
        %v294 = vadd.f32 %v293, %v198
        %v295 = vadd.f32 %v294, %v199
        %v296 = vadd.f32 %v295, %v200
        %v297 = vadd.f32 %v296, %v201
        %v298 = vadd.f32 %v297, %v202
        %v299 = vadd.f32 %v298, %v203
        %v300 = vadd.f32 %v299, %v204
        %v301 = vadd.f32 %v300, %v205
        %v302 = vadd.f32 %v301, %v206
        %v303 = vadd.f32 %v302, %v207
        %v304 = vrot.slane %v303, 4
        %v305 = vadd.f32 %v303, %v304
        %v306 = vrot.slane %v305, 2
        %v307 = vadd.f32 %v305, %v306
        %v308 = vrot.slane %v307, 1
        %v309 = vadd.f32 %v307, %v308
        %v310 = vadd.f32 %v288, %v309
        %311 = vst [vmem:[%s186] sm:$0x1] %v310
        %p312 = scmp.eq.s32.totalorder %s22, 2
        // Predicated region
        $region33: #{slot_gcn_conv_forward.2} parent=23 // pred_check
          %p313 = pneg %p312
        $region34: #{slot_gcn_conv_forward.2} parent=23 // pred_check_branch
          %315 = sbr.rel (%p313) target = $region36
        $region35: #{slot_gcn_conv_forward.2} parent=23 // pred_region
          %v316 = vld [vmem:[%s186] sm:$0x1]
          %v317 = vmax.f32 %v316, 1.0
          %v318 = vrsqrt.pop %v317
          %319 = vst [vmem:[%s186] sm:$0x1] %v318
        $region36: #{slot_gcn_conv_forward.2} parent=23 // pred_fallthru
          _
        %s320 = sand.u32 %s67, 1
        %s321 = sand.u32 %s67, 1
        %s322 = smul.addr %s321, 64
        %s323 = scalar_lea.vmem [#allocation4], %s322
        %p324 = scmp.lt.s32.totalorder %s21, 2
        %s325 = scalar_select %p324, %s21, 2
        %s326 = scalar_lea.vmem %s2, %s325
        // Predicated region
        $region37: #{slot_gcn_conv_forward.2} parent=23 // pred_check
          %p327 = pneg %p77
        $region38: #{slot_gcn_conv_forward.2} parent=23 // pred_check_branch
          %329 = sbr.rel (%p327) target = $region40
        $region39: #{slot_gcn_conv_forward.2} parent=23 // pred_region
          %s330 = smul.u32 16, %s22
          %s331 = smul.addr %s330, 3
          %s332 = sadd.s32 %s21, %s331
          %s333 = smul.addr %s332, 4
          %s334 = scalar_lea.vmem %s1, %s333
          // Predicated region
          $region41: #{slot_gcn_conv_forward.2} parent=39 // pred_check
            _
          $region42: #{slot_gcn_conv_forward.2} parent=39 // pred_check_branch
            %336 = sbr.rel (0) target = $region44
          $region43: #{slot_gcn_conv_forward.2} parent=39 // pred_region
            // Predicated region
            $region45: #{slot_gcn_conv_forward.2} parent=43 // pred_check
              _
            $region46: #{slot_gcn_conv_forward.2} parent=43 // pred_check_branch
              %338 = sbr.rel target = $region48
            $region47: #{slot_gcn_conv_forward.2} parent=43 // pred_region
              // Predicated region
              $region60: #{slot_gcn_conv_forward.2} parent=47 // pred_check
                _
              $region61: #{slot_gcn_conv_forward.2} parent=47 // pred_check_branch
                %384 = sbr.rel (0) target = $region63
              $region62: #{slot_gcn_conv_forward.2} parent=47 // pred_region
                loop: start=0, step=1, limit=1
                $region64: #{slot_gcn_conv_forward.2} parent=62 // loop_pre_header
                  _
                $region65: #{slot_gcn_conv_forward.2} parent=62 // loop_header
                  %s386 = sphi 0, %s390
                  %p387 = scmp.ge.s32.totalorder %s386, 1
                  %s391 = sphi %s323, %s323
                  %s392 = sphi %s334, %s334
                $region66: #{slot_gcn_conv_forward.2} parent=62 // loop_header_branch
                  %389 = sbr.rel (%p387) target = $region70
                $region67: #{slot_gcn_conv_forward.2} parent=62 // loop_body
                  _
                $region68: #{slot_gcn_conv_forward.2} parent=62 // loop_footer
                  %s390 = sadd.s32 1, %s386
                $region69: #{slot_gcn_conv_forward.2} parent=62 // loop_footer_branch
                  %385 = sbr.rel target = $region65
                $region70: #{slot_gcn_conv_forward.2} parent=62 // loop_exit
                  _
                %s394 = ssub.s32 16, 1
                loop: start=0, step=1, limit=1
                $region71: #{slot_gcn_conv_forward.2} parent=62 // loop_pre_header
                  _
                $region72: #{slot_gcn_conv_forward.2} parent=62 // loop_header
                  %s396 = sphi 0, %s400
                  %p397 = scmp.ge.s32.totalorder %s396, 1
                  %s401 = sphi %s323, %s323
                  %s402 = sphi %s334, %s334
                $region73: #{slot_gcn_conv_forward.2} parent=62 // loop_header_branch
                  %399 = sbr.rel (%p397) target = $region77
                $region74: #{slot_gcn_conv_forward.2} parent=62 // loop_body
                  %v403 = vld [vmem:[%s401] sm:%s394]
                  %404 = vst [vmem:[%s402] sm:%s394] %v403
                  %v405 = vld [vmem:[%s401 + $0x4] sm:%s394]
                  %406 = vst [vmem:[%s402 + $0xc] sm:%s394] %v405
                  %v407 = vld [vmem:[%s401 + $0x8] sm:%s394]
                  %408 = vst [vmem:[%s402 + $0x18] sm:%s394] %v407
                  %v409 = vld [vmem:[%s401 + $0xc] sm:%s394]
                  %410 = vst [vmem:[%s402 + $0x24] sm:%s394] %v409
                  %v411 = vld [vmem:[%s401 + $0x10] sm:%s394]
                  %412 = vst [vmem:[%s402 + $0x30] sm:%s394] %v411
                  %v413 = vld [vmem:[%s401 + $0x14] sm:%s394]
                  %414 = vst [vmem:[%s402 + $0x3c] sm:%s394] %v413
                  %v415 = vld [vmem:[%s401 + $0x18] sm:%s394]
                  %416 = vst [vmem:[%s402 + $0x48] sm:%s394] %v415
                  %v417 = vld [vmem:[%s401 + $0x1c] sm:%s394]
                  %418 = vst [vmem:[%s402 + $0x54] sm:%s394] %v417
                  %v419 = vld [vmem:[%s401 + $0x20] sm:%s394]
                  %420 = vst [vmem:[%s402 + $0x60] sm:%s394] %v419
                  %v421 = vld [vmem:[%s401 + $0x24] sm:%s394]
                  %422 = vst [vmem:[%s402 + $0x6c] sm:%s394] %v421
                  %v423 = vld [vmem:[%s401 + $0x28] sm:%s394]
                  %424 = vst [vmem:[%s402 + $0x78] sm:%s394] %v423
                  %v425 = vld [vmem:[%s401 + $0x2c] sm:%s394]
                  %426 = vst [vmem:[%s402 + $0x84] sm:%s394] %v425
                  %v427 = vld [vmem:[%s401 + $0x30] sm:%s394]
                  %428 = vst [vmem:[%s402 + $0x90] sm:%s394] %v427
                  %v429 = vld [vmem:[%s401 + $0x34] sm:%s394]
                  %430 = vst [vmem:[%s402 + $0x9c] sm:%s394] %v429
                  %v431 = vld [vmem:[%s401 + $0x38] sm:%s394]
                  %432 = vst [vmem:[%s402 + $0xa8] sm:%s394] %v431
                  %v433 = vld [vmem:[%s401 + $0x3c] sm:%s394]
                  %434 = vst [vmem:[%s402 + $0xb4] sm:%s394] %v433
                $region75: #{slot_gcn_conv_forward.2} parent=62 // loop_footer
                  %s400 = sadd.s32 1, %s396
                $region76: #{slot_gcn_conv_forward.2} parent=62 // loop_footer_branch
                  %395 = sbr.rel target = $region72
                $region77: #{slot_gcn_conv_forward.2} parent=62 // loop_exit
                  _
              $region63: #{slot_gcn_conv_forward.2} parent=47 // pred_fallthru
                _
            $region48: #{slot_gcn_conv_forward.2} parent=43 // pred_fallthru
              _
            // Predicated region
            $region49: #{slot_gcn_conv_forward.2} parent=43 // pred_check
              _
            $region50: #{slot_gcn_conv_forward.2} parent=43 // pred_check_branch
              %340 = sbr.rel (0) target = $region52
            $region51: #{slot_gcn_conv_forward.2} parent=43 // pred_region
              %s342 = ssub.s32 16, 1
              loop: start=0, step=1, limit=1
              $region53: #{slot_gcn_conv_forward.2} parent=51 // loop_pre_header
                _
              $region54: #{slot_gcn_conv_forward.2} parent=51 // loop_header
                %s344 = sphi 0, %s348
                %p345 = scmp.ge.s32.totalorder %s344, 1
                %s349 = sphi %s323, %s323
                %s350 = sphi %s334, %s334
              $region55: #{slot_gcn_conv_forward.2} parent=51 // loop_header_branch
                %347 = sbr.rel (%p345) target = $region59
              $region56: #{slot_gcn_conv_forward.2} parent=51 // loop_body
                %v351 = vld [vmem:[%s349] sm:%s342]
                %352 = vst [vmem:[%s350] sm:%s342] %v351
                %v353 = vld [vmem:[%s349 + $0x4] sm:%s342]
                %354 = vst [vmem:[%s350 + $0xc] sm:%s342] %v353
                %v355 = vld [vmem:[%s349 + $0x8] sm:%s342]
                %356 = vst [vmem:[%s350 + $0x18] sm:%s342] %v355
                %v357 = vld [vmem:[%s349 + $0xc] sm:%s342]
                %358 = vst [vmem:[%s350 + $0x24] sm:%s342] %v357
                %v359 = vld [vmem:[%s349 + $0x10] sm:%s342]
                %360 = vst [vmem:[%s350 + $0x30] sm:%s342] %v359
                %v361 = vld [vmem:[%s349 + $0x14] sm:%s342]
                %362 = vst [vmem:[%s350 + $0x3c] sm:%s342] %v361
                %v363 = vld [vmem:[%s349 + $0x18] sm:%s342]
                %364 = vst [vmem:[%s350 + $0x48] sm:%s342] %v363
                %v365 = vld [vmem:[%s349 + $0x1c] sm:%s342]
                %366 = vst [vmem:[%s350 + $0x54] sm:%s342] %v365
                %v367 = vld [vmem:[%s349 + $0x20] sm:%s342]
                %368 = vst [vmem:[%s350 + $0x60] sm:%s342] %v367
                %v369 = vld [vmem:[%s349 + $0x24] sm:%s342]
                %370 = vst [vmem:[%s350 + $0x6c] sm:%s342] %v369
                %v371 = vld [vmem:[%s349 + $0x28] sm:%s342]
                %372 = vst [vmem:[%s350 + $0x78] sm:%s342] %v371
                %v373 = vld [vmem:[%s349 + $0x2c] sm:%s342]
                %374 = vst [vmem:[%s350 + $0x84] sm:%s342] %v373
                %v375 = vld [vmem:[%s349 + $0x30] sm:%s342]
                %376 = vst [vmem:[%s350 + $0x90] sm:%s342] %v375
                %v377 = vld [vmem:[%s349 + $0x34] sm:%s342]
                %378 = vst [vmem:[%s350 + $0x9c] sm:%s342] %v377
                %v379 = vld [vmem:[%s349 + $0x38] sm:%s342]
                %380 = vst [vmem:[%s350 + $0xa8] sm:%s342] %v379
                %v381 = vld [vmem:[%s349 + $0x3c] sm:%s342]
                %382 = vst [vmem:[%s350 + $0xb4] sm:%s342] %v381
              $region57: #{slot_gcn_conv_forward.2} parent=51 // loop_footer
                %s348 = sadd.s32 1, %s344
              $region58: #{slot_gcn_conv_forward.2} parent=51 // loop_footer_branch
                %343 = sbr.rel target = $region54
              $region59: #{slot_gcn_conv_forward.2} parent=51 // loop_exit
                _
            $region52: #{slot_gcn_conv_forward.2} parent=43 // pred_fallthru
              _
          $region44: #{slot_gcn_conv_forward.2} parent=39 // pred_fallthru
            _
          %435 = vnop
        $region40: #{slot_gcn_conv_forward.2} parent=23 // pred_fallthru
          _
        // Predicated region
        $region78: #{slot_gcn_conv_forward.2} parent=23 // pred_check
          %p436 = pneg %p103
        $region79: #{slot_gcn_conv_forward.2} parent=23 // pred_check_branch
          %438 = sbr.rel (%p436) target = $region81
        $region80: #{slot_gcn_conv_forward.2} parent=23 // pred_region
          _
        $region81: #{slot_gcn_conv_forward.2} parent=23 // pred_fallthru
          _
      $region24: #{slot_gcn_conv_forward.2} parent=5 // pred_fallthru
        _
      %p439 = scmp.le.s32.totalorder 2, %s12
      // Predicated region
      $region82: #{slot_gcn_conv_forward.2} parent=5 // pred_check
        %p440 = pneg %p439
      $region83: #{slot_gcn_conv_forward.2} parent=5 // pred_check_branch
        %442 = sbr.rel (%p440) target = $region85
      $region84: #{slot_gcn_conv_forward.2} parent=5 // pred_region
        %s443 = ssub.s32 %s12, 2
        // Predicated region
        $region86: #{slot_gcn_conv_forward.2} parent=84 // pred_check
          %p444 = pneg %p83
        $region87: #{slot_gcn_conv_forward.2} parent=84 // pred_check_branch
          %446 = sbr.rel (%p444) target = $region89
        $region88: #{slot_gcn_conv_forward.2} parent=84 // pred_region
          %s447 = sand.u32 %s68, 1
          %s448 = sand.u32 %s68, 1
          %s449 = smul.addr %s448, 64
          %s450 = scalar_lea.vmem [#allocation4], %s449
        $region89: #{slot_gcn_conv_forward.2} parent=84 // pred_fallthru
          _
        // Predicated region
        $region90: #{slot_gcn_conv_forward.2} parent=84 // pred_check
          %p451 = pneg %p109
        $region91: #{slot_gcn_conv_forward.2} parent=84 // pred_check_branch
          %453 = sbr.rel (%p451) target = $region93
        $region92: #{slot_gcn_conv_forward.2} parent=84 // pred_region
          %p454 = scmp.lt.s32.totalorder %s23, 2
          %s455 = scalar_select %p454, %s23, 2
          %s456 = scalar_lea.vmem %s2, %s455
        $region93: #{slot_gcn_conv_forward.2} parent=84 // pred_fallthru
          _
      $region85: #{slot_gcn_conv_forward.2} parent=5 // pred_fallthru
        _
    $region6: #{slot_gcn_conv_forward.2} parent=1 // loop_footer
      %s16 = sadd.s32 1, %s12
    $region7: #{slot_gcn_conv_forward.2} parent=1 // loop_footer_branch
      %11 = sbr.rel target = $region3
    $region8: #{slot_gcn_conv_forward.2} parent=1 // loop_exit
      _
    %457 = vsyncpa [#allocation3], 1
    %s458 = scalar_lea.sflag [#allocation3], 1
    %459 = vsyncpa %s458, 1

// kernel: slot_gcn_conv_forward.3
$region0: #{slot_gcn_conv_forward.3}
  #allocation0 [shape = 'u32[]', space=smem, size = 0x4, offset = 0x4, fixed_abs, tag = 'smem constant byte address 0x4 - core index']
  #allocation1 [shape = 'u32[144,128]{1,0:T(1,128)}', space=vmem, size = 0x12000, scoped, tag = 'internal scratch']
  %s0 = inlined_call_operand.vmem [shape: bf16[384,384], index: 0, kind: input, shape index: {}]
  %s1 = inlined_call_operand.vmem [shape: bf16[384,128], index: 1, kind: input, shape index: {}]
  %s2 = inlined_call_operand.vmem [shape: f32[1,128], index: 2, kind: input, shape index: {}]
  %s3 = inlined_call_operand.vmem [shape: f32[384,128], index: 3, kind: output, shape index: {}]
  %s4 = sld [smem:[#allocation0]]
  $region94: #{slot_gcn_conv_forward.3} parent=0
    _
  %s6 = ssub.s32 1, %s4
  %s7 = scalar_select 0, %s6, %s4
  $region1: #{slot_gcn_conv_forward.3} parent=0
    #allocation2 [shape = 'u8[65536]{0}', space=vmem, size = 0x10000, scoped, tag = 'input window, operand 0']
    loop: start=0, step=1, limit=11
    $region2: #{slot_gcn_conv_forward.3} parent=1 // loop_pre_header
      _
    $region3: #{slot_gcn_conv_forward.3} parent=1 // loop_header
      %s9 = sphi 0, %s13
      %p10 = scmp.ge.s32.totalorder %s9, 11
      %s16 = sphi 0, %s28
      %s17 = sphi 0, %s24
      %s18 = sphi 0, %s16
      %s19 = sphi 0, %s17
      %s20 = sphi 0, %s18
      %s21 = sphi 0, %s19
      %s33 = sphi 0, %s35
      %s36 = sphi 0, %s33
      %s37 = sphi 0, %s36
      %s53 = sphi 0, %s37
      %s59 = sphi 0, %s61
      %s62 = sphi 0, %s59
      %s63 = sphi 0, %s62
      %s79 = sphi 0, %s63
      %s83 = sphi 0, %s83
      %s85 = sphi 0, %s83
      %s86 = sphi 0, %s85
      %s100 = sphi 0, %s86
      %s106 = sphi 0, %s108
      %s109 = sphi 0, %s106
      %s110 = sphi 0, %s109
      %s126 = sphi 0, %s110
    $region4: #{slot_gcn_conv_forward.3} parent=1 // loop_header_branch
      %12 = sbr.rel (%p10) target = $region8
    $region5: #{slot_gcn_conv_forward.3} parent=1 // loop_body
      %s14 = ssub.s32 %s9, 1
      %s15 = ssub.s32 %s9, 2
      %s22 = sadd.s32 1, %s17
      %p23 = scmp.ge.s32.totalorder %s22, 3
      %s24 = scalar_select %p23, 0, %s22
      %s25 = sadd.s32 1, %s16
      %s26 = scalar_select %p23, %s25, %s16
      %p27 = scmp.ge.s32.totalorder %s26, 3
      %s28 = scalar_select %p27, 0, %s26
      %s29 = ssub.s32 %s16, %s28
      %s30 = ssub.s32 %s17, %s24
      %s31 = sor.u32 %s29, %s30
      %p32 = scmp.eq.s32.totalorder %s31, 0
      %s34 = sadd.s32 %s33, 1
      %s35 = scalar_select %p32, %s33, %s34
      %p38 = pneg %p32
      %p39 = scmp.eq.s32.totalorder %s9, 8
      %p40 = por %p38, %p39
      %p41 = scmp.ne.s32.totalorder %s33, %s36
      %p42 = scmp.eq.s32.totalorder %s9, 0
      %p43 = por %p41, %p42
      %p44 = scmp.ne.s32.totalorder %s33, %s36
      %p45 = scmp.eq.s32.totalorder %s14, 8
      %p46 = por %p44, %p45
      %p47 = scmp.ne.s32.totalorder %s36, %s37
      %p48 = scmp.eq.s32.totalorder %s14, 0
      %p49 = por %p47, %p48
      %p50 = scmp.ne.s32.totalorder %s36, %s37
      %p51 = scmp.eq.s32.totalorder %s15, 8
      %p52 = por %p50, %p51
      %p54 = scmp.ne.s32.totalorder %s37, %s53
      %p55 = scmp.eq.s32.totalorder %s15, 0
      %p56 = por %p54, %p55
      %s57 = ssub.s32 %s17, %s24
      %p58 = scmp.eq.s32.totalorder %s57, 0
      %s60 = sadd.s32 %s59, 1
      %s61 = scalar_select %p58, %s59, %s60
      %p64 = pneg %p58
      %p65 = scmp.eq.s32.totalorder %s9, 8
      %p66 = por %p64, %p65
      %p67 = scmp.ne.s32.totalorder %s59, %s62
      %p68 = scmp.eq.s32.totalorder %s9, 0
      %p69 = por %p67, %p68
      %p70 = scmp.ne.s32.totalorder %s59, %s62
      %p71 = scmp.eq.s32.totalorder %s14, 8
      %p72 = por %p70, %p71
      %p73 = scmp.ne.s32.totalorder %s62, %s63
      %p74 = scmp.eq.s32.totalorder %s14, 0
      %p75 = por %p73, %p74
      %p76 = scmp.ne.s32.totalorder %s62, %s63
      %p77 = scmp.eq.s32.totalorder %s15, 8
      %p78 = por %p76, %p77
      %p80 = scmp.ne.s32.totalorder %s63, %s79
      %p81 = scmp.eq.s32.totalorder %s15, 0
      %p82 = por %p80, %p81
      %s84 = sadd.s32 %s83, 1
      %p87 = scmp.eq.s32.totalorder %s9, 8
      %p88 = scmp.ne.s32.totalorder %s83, %s85
      %p89 = scmp.eq.s32.totalorder %s9, 0
      %p90 = por %p88, %p89
      %p91 = scmp.ne.s32.totalorder %s83, %s85
      %p92 = scmp.eq.s32.totalorder %s14, 8
      %p93 = por %p91, %p92
      %p94 = scmp.ne.s32.totalorder %s85, %s86
      %p95 = scmp.eq.s32.totalorder %s14, 0
      %p96 = por %p94, %p95
      %p97 = scmp.ne.s32.totalorder %s85, %s86
      %p98 = scmp.eq.s32.totalorder %s15, 8
      %p99 = por %p97, %p98
      %p101 = scmp.ne.s32.totalorder %s86, %s100
      %p102 = scmp.eq.s32.totalorder %s15, 0
      %p103 = por %p101, %p102
      %s104 = ssub.s32 %s16, %s28
      %p105 = scmp.eq.s32.totalorder %s104, 0
      %s107 = sadd.s32 %s106, 1
      %s108 = scalar_select %p105, %s106, %s107
      %p111 = pneg %p105
      %p112 = scmp.eq.s32.totalorder %s9, 8
      %p113 = por %p111, %p112
      %p114 = scmp.ne.s32.totalorder %s106, %s109
      %p115 = scmp.eq.s32.totalorder %s9, 0
      %p116 = por %p114, %p115
      %p117 = scmp.ne.s32.totalorder %s106, %s109
      %p118 = scmp.eq.s32.totalorder %s14, 8
      %p119 = por %p117, %p118
      %p120 = scmp.ne.s32.totalorder %s109, %s110
      %p121 = scmp.eq.s32.totalorder %s14, 0
      %p122 = por %p120, %p121
      %p123 = scmp.ne.s32.totalorder %s109, %s110
      %p124 = scmp.eq.s32.totalorder %s15, 8
      %p125 = por %p123, %p124
      %p127 = scmp.ne.s32.totalorder %s110, %s126
      %p128 = scmp.eq.s32.totalorder %s15, 0
      %p129 = por %p127, %p128
      %p130 = scmp.le.s32.totalorder 1, %s9
      %p131 = scmp.lt.s32.totalorder %s9, 10
      %p132 = pnand %p130, %p131
      %p133 = pneg %p132
      // Predicated region
      $region9: #{slot_gcn_conv_forward.3} parent=5 // pred_check
        _
      $region10: #{slot_gcn_conv_forward.3} parent=5 // pred_check_branch
        %135 = sbr.rel (%p132) target = $region12
      $region11: #{slot_gcn_conv_forward.3} parent=5 // pred_region
        %s136 = ssub.s32 %s9, 1
        // Predicated region
        $region13: #{slot_gcn_conv_forward.3} parent=11 // pred_check
          %p137 = pneg %p96
        $region14: #{slot_gcn_conv_forward.3} parent=11 // pred_check_branch
          %139 = sbr.rel (%p137) target = $region16
        $region15: #{slot_gcn_conv_forward.3} parent=11 // pred_region
          _
        $region16: #{slot_gcn_conv_forward.3} parent=11 // pred_fallthru
          _
      $region12: #{slot_gcn_conv_forward.3} parent=5 // pred_fallthru
        _
      %p140 = scmp.lt.s32.totalorder %s9, 9
      // Predicated region
      $region17: #{slot_gcn_conv_forward.3} parent=5 // pred_check
        %p141 = pneg %p140
      $region18: #{slot_gcn_conv_forward.3} parent=5 // pred_check_branch
        %143 = sbr.rel (%p141) target = $region20
      $region19: #{slot_gcn_conv_forward.3} parent=5 // pred_region
        // Predicated region
        $region21: #{slot_gcn_conv_forward.3} parent=19 // pred_check
          %p144 = pneg %p43
        $region22: #{slot_gcn_conv_forward.3} parent=19 // pred_check_branch
          %146 = sbr.rel (%p144) target = $region24
        $region23: #{slot_gcn_conv_forward.3} parent=19 // pred_region
          %s147 = sand.u32 %s33, 1
          %s148 = sand.u32 %s33, 1
          %s149 = smul.addr %s148, 64
          %s150 = scalar_lea.vmem [#allocation2], %s149
          %s151 = smul.u32 16, %s16
          %s152 = smul.addr %s151, 3
          %s153 = sadd.s32 %s17, %s152
          %s154 = smul.addr %s153, 4
          %s155 = scalar_lea.vmem %s0, %s154
          // Predicated region
          $region25: #{slot_gcn_conv_forward.3} parent=23 // pred_check
            _
          $region26: #{slot_gcn_conv_forward.3} parent=23 // pred_check_branch
            %157 = sbr.rel (0) target = $region28
          $region27: #{slot_gcn_conv_forward.3} parent=23 // pred_region
            // Predicated region
            $region29: #{slot_gcn_conv_forward.3} parent=27 // pred_check
              _
            $region30: #{slot_gcn_conv_forward.3} parent=27 // pred_check_branch
              %159 = sbr.rel target = $region32
            $region31: #{slot_gcn_conv_forward.3} parent=27 // pred_region
              // Predicated region
              $region44: #{slot_gcn_conv_forward.3} parent=31 // pred_check
                _
              $region45: #{slot_gcn_conv_forward.3} parent=31 // pred_check_branch
                %205 = sbr.rel (0) target = $region47
              $region46: #{slot_gcn_conv_forward.3} parent=31 // pred_region
                loop: start=0, step=1, limit=1
                $region48: #{slot_gcn_conv_forward.3} parent=46 // loop_pre_header
                  _
                $region49: #{slot_gcn_conv_forward.3} parent=46 // loop_header
                  %s207 = sphi 0, %s211
                  %p208 = scmp.ge.s32.totalorder %s207, 1
                  %s212 = sphi %s155, %s155
                  %s213 = sphi %s150, %s150
                $region50: #{slot_gcn_conv_forward.3} parent=46 // loop_header_branch
                  %210 = sbr.rel (%p208) target = $region54
                $region51: #{slot_gcn_conv_forward.3} parent=46 // loop_body
                  _
                $region52: #{slot_gcn_conv_forward.3} parent=46 // loop_footer
                  %s211 = sadd.s32 1, %s207
                $region53: #{slot_gcn_conv_forward.3} parent=46 // loop_footer_branch
                  %206 = sbr.rel target = $region49
                $region54: #{slot_gcn_conv_forward.3} parent=46 // loop_exit
                  _
                %s215 = ssub.s32 16, 1
                loop: start=0, step=1, limit=1
                $region55: #{slot_gcn_conv_forward.3} parent=46 // loop_pre_header
                  _
                $region56: #{slot_gcn_conv_forward.3} parent=46 // loop_header
                  %s217 = sphi 0, %s221
                  %p218 = scmp.ge.s32.totalorder %s217, 1
                  %s222 = sphi %s155, %s155
                  %s223 = sphi %s150, %s150
                $region57: #{slot_gcn_conv_forward.3} parent=46 // loop_header_branch
                  %220 = sbr.rel (%p218) target = $region61
                $region58: #{slot_gcn_conv_forward.3} parent=46 // loop_body
                  %v224 = vld [vmem:[%s222] sm:%s215]
                  %225 = vst [vmem:[%s223] sm:%s215] %v224
                  %v226 = vld [vmem:[%s222 + $0xc] sm:%s215]
                  %227 = vst [vmem:[%s223 + $0x4] sm:%s215] %v226
                  %v228 = vld [vmem:[%s222 + $0x18] sm:%s215]
                  %229 = vst [vmem:[%s223 + $0x8] sm:%s215] %v228
                  %v230 = vld [vmem:[%s222 + $0x24] sm:%s215]
                  %231 = vst [vmem:[%s223 + $0xc] sm:%s215] %v230
                  %v232 = vld [vmem:[%s222 + $0x30] sm:%s215]
                  %233 = vst [vmem:[%s223 + $0x10] sm:%s215] %v232
                  %v234 = vld [vmem:[%s222 + $0x3c] sm:%s215]
                  %235 = vst [vmem:[%s223 + $0x14] sm:%s215] %v234
                  %v236 = vld [vmem:[%s222 + $0x48] sm:%s215]
                  %237 = vst [vmem:[%s223 + $0x18] sm:%s215] %v236
                  %v238 = vld [vmem:[%s222 + $0x54] sm:%s215]
                  %239 = vst [vmem:[%s223 + $0x1c] sm:%s215] %v238
                  %v240 = vld [vmem:[%s222 + $0x60] sm:%s215]
                  %241 = vst [vmem:[%s223 + $0x20] sm:%s215] %v240
                  %v242 = vld [vmem:[%s222 + $0x6c] sm:%s215]
                  %243 = vst [vmem:[%s223 + $0x24] sm:%s215] %v242
                  %v244 = vld [vmem:[%s222 + $0x78] sm:%s215]
                  %245 = vst [vmem:[%s223 + $0x28] sm:%s215] %v244
                  %v246 = vld [vmem:[%s222 + $0x84] sm:%s215]
                  %247 = vst [vmem:[%s223 + $0x2c] sm:%s215] %v246
                  %v248 = vld [vmem:[%s222 + $0x90] sm:%s215]
                  %249 = vst [vmem:[%s223 + $0x30] sm:%s215] %v248
                  %v250 = vld [vmem:[%s222 + $0x9c] sm:%s215]
                  %251 = vst [vmem:[%s223 + $0x34] sm:%s215] %v250
                  %v252 = vld [vmem:[%s222 + $0xa8] sm:%s215]
                  %253 = vst [vmem:[%s223 + $0x38] sm:%s215] %v252
                  %v254 = vld [vmem:[%s222 + $0xb4] sm:%s215]
                  %255 = vst [vmem:[%s223 + $0x3c] sm:%s215] %v254
                $region59: #{slot_gcn_conv_forward.3} parent=46 // loop_footer
                  %s221 = sadd.s32 1, %s217
                $region60: #{slot_gcn_conv_forward.3} parent=46 // loop_footer_branch
                  %216 = sbr.rel target = $region56
                $region61: #{slot_gcn_conv_forward.3} parent=46 // loop_exit
                  _
              $region47: #{slot_gcn_conv_forward.3} parent=31 // pred_fallthru
                _
            $region32: #{slot_gcn_conv_forward.3} parent=27 // pred_fallthru
              _
            // Predicated region
            $region33: #{slot_gcn_conv_forward.3} parent=27 // pred_check
              _
            $region34: #{slot_gcn_conv_forward.3} parent=27 // pred_check_branch
              %161 = sbr.rel (0) target = $region36
            $region35: #{slot_gcn_conv_forward.3} parent=27 // pred_region
              %s163 = ssub.s32 16, 1
              loop: start=0, step=1, limit=1
              $region37: #{slot_gcn_conv_forward.3} parent=35 // loop_pre_header
                _
              $region38: #{slot_gcn_conv_forward.3} parent=35 // loop_header
                %s165 = sphi 0, %s169
                %p166 = scmp.ge.s32.totalorder %s165, 1
                %s170 = sphi %s155, %s155
                %s171 = sphi %s150, %s150
              $region39: #{slot_gcn_conv_forward.3} parent=35 // loop_header_branch
                %168 = sbr.rel (%p166) target = $region43
              $region40: #{slot_gcn_conv_forward.3} parent=35 // loop_body
                %v172 = vld [vmem:[%s170] sm:%s163]
                %173 = vst [vmem:[%s171] sm:%s163] %v172
                %v174 = vld [vmem:[%s170 + $0xc] sm:%s163]
                %175 = vst [vmem:[%s171 + $0x4] sm:%s163] %v174
                %v176 = vld [vmem:[%s170 + $0x18] sm:%s163]
                %177 = vst [vmem:[%s171 + $0x8] sm:%s163] %v176
                %v178 = vld [vmem:[%s170 + $0x24] sm:%s163]
                %179 = vst [vmem:[%s171 + $0xc] sm:%s163] %v178
                %v180 = vld [vmem:[%s170 + $0x30] sm:%s163]
                %181 = vst [vmem:[%s171 + $0x10] sm:%s163] %v180
                %v182 = vld [vmem:[%s170 + $0x3c] sm:%s163]
                %183 = vst [vmem:[%s171 + $0x14] sm:%s163] %v182
                %v184 = vld [vmem:[%s170 + $0x48] sm:%s163]
                %185 = vst [vmem:[%s171 + $0x18] sm:%s163] %v184
                %v186 = vld [vmem:[%s170 + $0x54] sm:%s163]
                %187 = vst [vmem:[%s171 + $0x1c] sm:%s163] %v186
                %v188 = vld [vmem:[%s170 + $0x60] sm:%s163]
                %189 = vst [vmem:[%s171 + $0x20] sm:%s163] %v188
                %v190 = vld [vmem:[%s170 + $0x6c] sm:%s163]
                %191 = vst [vmem:[%s171 + $0x24] sm:%s163] %v190
                %v192 = vld [vmem:[%s170 + $0x78] sm:%s163]
                %193 = vst [vmem:[%s171 + $0x28] sm:%s163] %v192
                %v194 = vld [vmem:[%s170 + $0x84] sm:%s163]
                %195 = vst [vmem:[%s171 + $0x2c] sm:%s163] %v194
                %v196 = vld [vmem:[%s170 + $0x90] sm:%s163]
                %197 = vst [vmem:[%s171 + $0x30] sm:%s163] %v196
                %v198 = vld [vmem:[%s170 + $0x9c] sm:%s163]
                %199 = vst [vmem:[%s171 + $0x34] sm:%s163] %v198
                %v200 = vld [vmem:[%s170 + $0xa8] sm:%s163]
                %201 = vst [vmem:[%s171 + $0x38] sm:%s163] %v200
                %v202 = vld [vmem:[%s170 + $0xb4] sm:%s163]
                %203 = vst [vmem:[%s171 + $0x3c] sm:%s163] %v202
              $region41: #{slot_gcn_conv_forward.3} parent=35 // loop_footer
                %s169 = sadd.s32 1, %s165
              $region42: #{slot_gcn_conv_forward.3} parent=35 // loop_footer_branch
                %164 = sbr.rel target = $region38
              $region43: #{slot_gcn_conv_forward.3} parent=35 // loop_exit
                _
            $region36: #{slot_gcn_conv_forward.3} parent=27 // pred_fallthru
              _
          $region28: #{slot_gcn_conv_forward.3} parent=23 // pred_fallthru
            _
          %256 = vnop
        $region24: #{slot_gcn_conv_forward.3} parent=19 // pred_fallthru
          _
        // Predicated region
        $region62: #{slot_gcn_conv_forward.3} parent=19 // pred_check
          %p257 = pneg %p69
        $region63: #{slot_gcn_conv_forward.3} parent=19 // pred_check_branch
          %259 = sbr.rel (%p257) target = $region65
        $region64: #{slot_gcn_conv_forward.3} parent=19 // pred_region
          %s260 = smul.u32 16, %s17
          %p261 = scmp.lt.s32.totalorder %s260, 47
          %s262 = scalar_select %p261, %s260, 47
          %s263 = smul.addr %s262, 4
          %s264 = scalar_lea.vmem %s1, %s263
          %s265 = smul.u32 16, %s17
        $region65: #{slot_gcn_conv_forward.3} parent=19 // pred_fallthru
          _
      $region20: #{slot_gcn_conv_forward.3} parent=5 // pred_fallthru
        _
      %p266 = scmp.le.s32.totalorder 1, %s9
      %p267 = scmp.lt.s32.totalorder %s9, 10
      %p268 = pnand %p266, %p267
      %p269 = pneg %p268
      // Predicated region
      $region66: #{slot_gcn_conv_forward.3} parent=5 // pred_check
        _
      $region67: #{slot_gcn_conv_forward.3} parent=5 // pred_check_branch
        %271 = sbr.rel (%p268) target = $region69
      $region68: #{slot_gcn_conv_forward.3} parent=5 // pred_region
        %s272 = ssub.s32 %s9, 1
        %s273 = sand.u32 %s36, 1
        %s274 = sand.u32 %s36, 1
        %s275 = smul.addr %s274, 64
        %s276 = scalar_lea.vmem [#allocation2], %s275
        // Predicated region
        $region70: #{slot_gcn_conv_forward.3} parent=68 // pred_check
          %p277 = pneg %p49
        $region71: #{slot_gcn_conv_forward.3} parent=68 // pred_check_branch
          %279 = sbr.rel (%p277) target = $region73
        $region72: #{slot_gcn_conv_forward.3} parent=68 // pred_region
          _
        $region73: #{slot_gcn_conv_forward.3} parent=68 // pred_fallthru
          _
        %s280 = sand.u32 %s36, 1
        %s281 = sand.u32 %s36, 1
        %s282 = smul.addr %s281, 64
        %s283 = scalar_lea.vmem [#allocation2], %s282
        %p284 = pneg %p49
        %p285 = pneg %p46
        %s286 = smul.u32 16, %s19
        %p287 = scmp.lt.s32.totalorder %s286, 47
        %s288 = scalar_select %p287, %s286, 47
        %s289 = smul.addr %s288, 4
        %s290 = scalar_lea.vmem %s1, %s289
        %p291 = pneg %p75
        %p292 = pneg %p72
        %p293 = pneg %p96
        %p294 = pneg %p93
        %p295 = pneg %p122
        %p296 = pneg %p119
        %s297 = smul.u32 16, %s18
        %p298 = scmp.lt.s32.totalorder %s297, 47
        %s299 = scalar_select %p298, %s297, 47
        %s300 = smul.addr %s299, 8
        %s301 = scalar_lea.vmem %s3, %s300
        %s302 = smul.u32 16, %s18
        %s303 = smul.u32 16, %s19
        %p304 = scmp.lt.s32.totalorder %s303, 47
        %s305 = scalar_select %p304, %s303, 47
        %s306 = smul.addr %s305, 4
        %s307 = scalar_lea.vmem %s1, %s306
        %s308 = smul.u32 16, %s19
        %s309 = smul.u32 16, %s18
        %p310 = scmp.lt.s32.totalorder %s309, 47
        %s311 = scalar_select %p310, %s309, 47
        %s312 = smul.addr %s311, 8
        %s313 = scalar_lea.vmem %s3, %s312
        %s314 = smul.u32 16, %s18
        %p316 = scmp.eq.s32.totalorder %s19, 0
        // Predicated region
        $region74: #{slot_gcn_conv_forward.3} parent=68 // pred_check
          %p317 = pneg %p316
        $region75: #{slot_gcn_conv_forward.3} parent=68 // pred_check_branch
          %319 = sbr.rel (%p317) target = $region77
        $region76: #{slot_gcn_conv_forward.3} parent=68 // pred_region
          %320 = vst [vmem:[%s313] sm:$0xff] 0.0
          %321 = vst [vmem:[%s313 + $0x8] sm:$0xff] 0.0
          %322 = vst [vmem:[%s313 + $0x10] sm:$0xff] 0.0
          %323 = vst [vmem:[%s313 + $0x18] sm:$0xff] 0.0
          %324 = vst [vmem:[%s313 + $0x20] sm:$0xff] 0.0
          %325 = vst [vmem:[%s313 + $0x28] sm:$0xff] 0.0
          %326 = vst [vmem:[%s313 + $0x30] sm:$0xff] 0.0
          %327 = vst [vmem:[%s313 + $0x38] sm:$0xff] 0.0
          %328 = vst [vmem:[%s313 + $0x40] sm:$0xff] 0.0
          %329 = vst [vmem:[%s313 + $0x48] sm:$0xff] 0.0
          %330 = vst [vmem:[%s313 + $0x50] sm:$0xff] 0.0
          %331 = vst [vmem:[%s313 + $0x58] sm:$0xff] 0.0
          %332 = vst [vmem:[%s313 + $0x60] sm:$0xff] 0.0
          %333 = vst [vmem:[%s313 + $0x68] sm:$0xff] 0.0
          %334 = vst [vmem:[%s313 + $0x70] sm:$0xff] 0.0
          %335 = vst [vmem:[%s313 + $0x78] sm:$0xff] 0.0
        $region77: #{slot_gcn_conv_forward.3} parent=68 // pred_fallthru
          _
        %v336 = vld [vmem:[%s313] sm:$0xff]
        %v337 = vld [vmem:[%s313 + $0x8] sm:$0xff]
        %v338 = vld [vmem:[%s313 + $0x10] sm:$0xff]
        %v339 = vld [vmem:[%s313 + $0x18] sm:$0xff]
        %v340 = vld [vmem:[%s313 + $0x20] sm:$0xff]
        %v341 = vld [vmem:[%s313 + $0x28] sm:$0xff]
        %v342 = vld [vmem:[%s313 + $0x30] sm:$0xff]
        %v343 = vld [vmem:[%s313 + $0x38] sm:$0xff]
        %v344 = vld [vmem:[%s313 + $0x40] sm:$0xff]
        %v345 = vld [vmem:[%s313 + $0x48] sm:$0xff]
        %v346 = vld [vmem:[%s313 + $0x50] sm:$0xff]
        %v347 = vld [vmem:[%s313 + $0x58] sm:$0xff]
        %v348 = vld [vmem:[%s313 + $0x60] sm:$0xff]
        %v349 = vld [vmem:[%s313 + $0x68] sm:$0xff]
        %v350 = vld [vmem:[%s313 + $0x70] sm:$0xff]
        %v351 = vld [vmem:[%s313 + $0x78] sm:$0xff]
        %v352 = vld [vmem:[%s276] sm:$0xf]
        %v353 = vld [vmem:[%s276 + $0x4] sm:$0xf]
        %v354 = vld [vmem:[%s276 + $0x8] sm:$0xf]
        %v355 = vld [vmem:[%s276 + $0xc] sm:$0xf]
        %v356 = vld [vmem:[%s276 + $0x10] sm:$0xf]
        %v357 = vld [vmem:[%s276 + $0x14] sm:$0xf]
        %v358 = vld [vmem:[%s276 + $0x18] sm:$0xf]
        %v359 = vld [vmem:[%s276 + $0x1c] sm:$0xf]
        %v360 = vld [vmem:[%s276 + $0x20] sm:$0xf]
        %v361 = vld [vmem:[%s276 + $0x24] sm:$0xf]
        %v362 = vld [vmem:[%s276 + $0x28] sm:$0xf]
        %v363 = vld [vmem:[%s276 + $0x2c] sm:$0xf]
        %v364 = vld [vmem:[%s276 + $0x30] sm:$0xf]
        %v365 = vld [vmem:[%s276 + $0x34] sm:$0xf]
        %v366 = vld [vmem:[%s276 + $0x38] sm:$0xf]
        %v367 = vld [vmem:[%s276 + $0x3c] sm:$0xf]
        %v368 = vld [vmem:[%s307] sm:$0xf]
        %v369 = vld [vmem:[%s307 + $0x4] sm:$0xf]
        %v370 = vld [vmem:[%s307 + $0x8] sm:$0xf]
        %v371 = vld [vmem:[%s307 + $0xc] sm:$0xf]
        %v372 = vld [vmem:[%s307 + $0x10] sm:$0xf]
        %v373 = vld [vmem:[%s307 + $0x14] sm:$0xf]
        %v374 = vld [vmem:[%s307 + $0x18] sm:$0xf]
        %v375 = vld [vmem:[%s307 + $0x1c] sm:$0xf]
        %v376 = vld [vmem:[%s307 + $0x20] sm:$0xf]
        %v377 = vld [vmem:[%s307 + $0x24] sm:$0xf]
        %v378 = vld [vmem:[%s307 + $0x28] sm:$0xf]
        %v379 = vld [vmem:[%s307 + $0x2c] sm:$0xf]
        %v380 = vld [vmem:[%s307 + $0x30] sm:$0xf]
        %v381 = vld [vmem:[%s307 + $0x34] sm:$0xf]
        %v382 = vld [vmem:[%s307 + $0x38] sm:$0xf]
        %v383 = vld [vmem:[%s307 + $0x3c] sm:$0xf]
        %v400 = vunpack.c.l.b16 %v352
        %v401 = vunpack.c.l.b16 %v353
        %v402 = vunpack.c.l.b16 %v354
        %v403 = vunpack.c.l.b16 %v355
        %v404 = vunpack.c.l.b16 %v356
        %v405 = vunpack.c.l.b16 %v357
        %v406 = vunpack.c.l.b16 %v358
        %v407 = vunpack.c.l.b16 %v359
        %v408 = vunpack.c.l.b16 %v360
        %v409 = vunpack.c.l.b16 %v361
        %v410 = vunpack.c.l.b16 %v362
        %v411 = vunpack.c.l.b16 %v363
        %v412 = vunpack.c.l.b16 %v364
        %v413 = vunpack.c.l.b16 %v365
        %v414 = vunpack.c.l.b16 %v366
        %v415 = vunpack.c.l.b16 %v367
        %v416 = vpack.c.b16 %v401, %v400
        %v417 = vpack.c.b16 %v403, %v402
        %v418 = vpack.c.b16 %v405, %v404
        %v419 = vpack.c.b16 %v407, %v406
        %v420 = vpack.c.b16 %v409, %v408
        %v421 = vpack.c.b16 %v411, %v410
        %v422 = vpack.c.b16 %v413, %v412
        %v423 = vpack.c.b16 %v415, %v414
        %v448 = vunpack.c.l.b16 %v368
        %v449 = vunpack.c.l.b16 %v369
        %v450 = vunpack.c.l.b16 %v370
        %v451 = vunpack.c.l.b16 %v371
        %v452 = vunpack.c.l.b16 %v372
        %v453 = vunpack.c.l.b16 %v373
        %v454 = vunpack.c.l.b16 %v374
        %v455 = vunpack.c.l.b16 %v375
        %v456 = vunpack.c.l.b16 %v376
        %v457 = vunpack.c.l.b16 %v377
        %v458 = vunpack.c.l.b16 %v378
        %v459 = vunpack.c.l.b16 %v379
        %v460 = vunpack.c.l.b16 %v380
        %v461 = vunpack.c.l.b16 %v381
        %v462 = vunpack.c.l.b16 %v382
        %v463 = vunpack.c.l.b16 %v383
        %v464 = vpack.c.b16 %v449, %v448
        %v465 = vpack.c.b16 %v451, %v450
        %v466 = vpack.c.b16 %v453, %v452
        %v467 = vpack.c.b16 %v455, %v454
        %v468 = vpack.c.b16 %v457, %v456
        %v469 = vpack.c.b16 %v459, %v458
        %v470 = vpack.c.b16 %v461, %v460
        %v471 = vpack.c.b16 %v463, %v462
        %480 = vmatprep.subr.bf16.mxu0 0
        %481 = vmatpush1.bf16.msra.mxu0 %v471
        %482 = vmatprep.subr.bf16.mxu0 0
        %483 = vmatpush1.bf16.msra.mxu0 %v470
        %484 = vmatprep.subr.bf16.mxu0 0
        %485 = vmatpush1.bf16.msra.mxu0 %v469
        %486 = vmatprep.subr.bf16.mxu0 0
        %487 = vmatpush1.bf16.msra.mxu0 %v468
        %488 = vmatprep.subr.bf16.mxu0 0
        %489 = vmatpush1.bf16.msra.mxu0 %v467
        %490 = vmatprep.subr.bf16.mxu0 0
        %491 = vmatpush1.bf16.msra.mxu0 %v466
        %492 = vmatprep.subr.bf16.mxu0 0
        %493 = vmatpush1.bf16.msra.mxu0 %v465
        %494 = vmatprep.subr.bf16.mxu0 0
        %495 = vmatpush1.bf16.msra.mxu0 %v464
        %496 = vmatprep.subr.bf16.mxu0 0
        %497 = vmatpush2.bf16.msra.mxu0 0
        %498 = vmatprep.subr.bf16.mxu0 0
        %499 = vmatpush2.bf16.msra.mxu0 0
        %500 = vmatprep.subr.bf16.mxu0 0
        %501 = vmatpush2.bf16.msra.mxu0 0
        %502 = vmatprep.subr.bf16.mxu0 0
        %503 = vmatpush2.bf16.msra.mxu0 0
        %504 = vmatprep.subr.bf16.mxu0 0
        %505 = vmatpush2.bf16.msra.mxu0 0
        %506 = vmatprep.subr.bf16.mxu0 0
        %507 = vmatpush2.bf16.msra.mxu0 0
        %508 = vmatprep.subr.bf16.mxu0 0
        %509 = vmatpush2.bf16.msra.mxu0 0
        %510 = vmatprep.subr.bf16.mxu0 0
        %511 = vmatpush2.bf16.msra.mxu0 0
        %512 = vmatprep.mubr.bf16.mxu0 0
        %513 = vmatmul.mubr.bf16.gmra.mxu0 %v416
        %v514 = vpop.f32.mrf.mxu0
        %v515 = vadd.f32 0.0, %v514
        %v516 = vpop.f32.mrf.mxu0
        %v517 = vpop.f32.mrf.mxu0
        %v518 = vadd.f32 0.0, %v517
        %v519 = vpop.f32.mrf.mxu0
        %520 = vmatprep.mubr.bf16.mxu0 0
        %521 = vmatmul.mubr.bf16.gmra.mxu0 %v417
        %v522 = vpop.f32.mrf.mxu0
        %v523 = vadd.f32 0.0, %v522
        %v524 = vpop.f32.mrf.mxu0
        %v525 = vpop.f32.mrf.mxu0
        %v526 = vadd.f32 0.0, %v525
        %v527 = vpop.f32.mrf.mxu0
        %528 = vmatprep.mubr.bf16.mxu0 0
        %529 = vmatmul.mubr.bf16.gmra.mxu0 %v418
        %v530 = vpop.f32.mrf.mxu0
        %v531 = vadd.f32 0.0, %v530
        %v532 = vpop.f32.mrf.mxu0
        %v533 = vpop.f32.mrf.mxu0
        %v534 = vadd.f32 0.0, %v533
        %v535 = vpop.f32.mrf.mxu0
        %536 = vmatprep.mubr.bf16.mxu0 0
        %537 = vmatmul.mubr.bf16.gmra.mxu0 %v419
        %v538 = vpop.f32.mrf.mxu0
        %v539 = vadd.f32 0.0, %v538
        %v540 = vpop.f32.mrf.mxu0
        %v541 = vpop.f32.mrf.mxu0
        %v542 = vadd.f32 0.0, %v541
        %v543 = vpop.f32.mrf.mxu0
        %544 = vmatprep.mubr.bf16.mxu0 0
        %545 = vmatmul.mubr.bf16.gmra.mxu0 %v420
        %v546 = vpop.f32.mrf.mxu0
        %v547 = vadd.f32 0.0, %v546
        %v548 = vpop.f32.mrf.mxu0
        %v549 = vpop.f32.mrf.mxu0
        %v550 = vadd.f32 0.0, %v549
        %v551 = vpop.f32.mrf.mxu0
        %552 = vmatprep.mubr.bf16.mxu0 0
        %553 = vmatmul.mubr.bf16.gmra.mxu0 %v421
        %v554 = vpop.f32.mrf.mxu0
        %v555 = vadd.f32 0.0, %v554
        %v556 = vpop.f32.mrf.mxu0
        %v557 = vpop.f32.mrf.mxu0
        %v558 = vadd.f32 0.0, %v557
        %v559 = vpop.f32.mrf.mxu0
        %560 = vmatprep.mubr.bf16.mxu0 0
        %561 = vmatmul.mubr.bf16.gmra.mxu0 %v422
        %v562 = vpop.f32.mrf.mxu0
        %v563 = vadd.f32 0.0, %v562
        %v564 = vpop.f32.mrf.mxu0
        %v565 = vpop.f32.mrf.mxu0
        %v566 = vadd.f32 0.0, %v565
        %v567 = vpop.f32.mrf.mxu0
        %568 = vmatprep.mubr.bf16.mxu0 0
        %569 = vmatmul.mubr.bf16.gmra.mxu0 %v423
        %v570 = vpop.f32.mrf.mxu0
        %v571 = vadd.f32 0.0, %v570
        %v572 = vpop.f32.mrf.mxu0
        %v573 = vpop.f32.mrf.mxu0
        %v574 = vadd.f32 0.0, %v573
        %v575 = vpop.f32.mrf.mxu0
        %576 = vdwg.mxu0
        %v577 = vadd.f32 %v336, %v515
        %v578 = vadd.f32 %v337, %v518
        %v579 = vadd.f32 %v338, %v523
        %v580 = vadd.f32 %v339, %v526
        %v581 = vadd.f32 %v340, %v531
        %v582 = vadd.f32 %v341, %v534
        %v583 = vadd.f32 %v342, %v539
        %v584 = vadd.f32 %v343, %v542
        %v585 = vadd.f32 %v344, %v547
        %v586 = vadd.f32 %v345, %v550
        %v587 = vadd.f32 %v346, %v555
        %v588 = vadd.f32 %v347, %v558
        %v589 = vadd.f32 %v348, %v563
        %v590 = vadd.f32 %v349, %v566
        %v591 = vadd.f32 %v350, %v571
        %v592 = vadd.f32 %v351, %v574
        %593 = vst [vmem:[%s313] sm:$0xff] %v577
        %594 = vst [vmem:[%s313 + $0x8] sm:$0xff] %v578
        %595 = vst [vmem:[%s313 + $0x10] sm:$0xff] %v579
        %596 = vst [vmem:[%s313 + $0x18] sm:$0xff] %v580
        %597 = vst [vmem:[%s313 + $0x20] sm:$0xff] %v581
        %598 = vst [vmem:[%s313 + $0x28] sm:$0xff] %v582
        %599 = vst [vmem:[%s313 + $0x30] sm:$0xff] %v583
        %600 = vst [vmem:[%s313 + $0x38] sm:$0xff] %v584
        %601 = vst [vmem:[%s313 + $0x40] sm:$0xff] %v585
        %602 = vst [vmem:[%s313 + $0x48] sm:$0xff] %v586
        %603 = vst [vmem:[%s313 + $0x50] sm:$0xff] %v587
        %604 = vst [vmem:[%s313 + $0x58] sm:$0xff] %v588
        %605 = vst [vmem:[%s313 + $0x60] sm:$0xff] %v589
        %606 = vst [vmem:[%s313 + $0x68] sm:$0xff] %v590
        %607 = vst [vmem:[%s313 + $0x70] sm:$0xff] %v591
        %608 = vst [vmem:[%s313 + $0x78] sm:$0xff] %v592
        %p609 = scmp.eq.s32.totalorder %s19, 2
        // Predicated region
        $region78: #{slot_gcn_conv_forward.3} parent=68 // pred_check
          %p610 = pneg %p609
        $region79: #{slot_gcn_conv_forward.3} parent=68 // pred_check_branch
          %612 = sbr.rel (%p610) target = $region81
        $region80: #{slot_gcn_conv_forward.3} parent=68 // pred_region
          %v613 = vld [vmem:[%s313] sm:$0xff]
          %v614 = vld [vmem:[%s313 + $0x8] sm:$0xff]
          %v615 = vld [vmem:[%s313 + $0x10] sm:$0xff]
          %v616 = vld [vmem:[%s313 + $0x18] sm:$0xff]
          %v617 = vld [vmem:[%s313 + $0x20] sm:$0xff]
          %v618 = vld [vmem:[%s313 + $0x28] sm:$0xff]
          %v619 = vld [vmem:[%s313 + $0x30] sm:$0xff]
          %v620 = vld [vmem:[%s313 + $0x38] sm:$0xff]
          %v621 = vld [vmem:[%s313 + $0x40] sm:$0xff]
          %v622 = vld [vmem:[%s313 + $0x48] sm:$0xff]
          %v623 = vld [vmem:[%s313 + $0x50] sm:$0xff]
          %v624 = vld [vmem:[%s313 + $0x58] sm:$0xff]
          %v625 = vld [vmem:[%s313 + $0x60] sm:$0xff]
          %v626 = vld [vmem:[%s313 + $0x68] sm:$0xff]
          %v627 = vld [vmem:[%s313 + $0x70] sm:$0xff]
          %v628 = vld [vmem:[%s313 + $0x78] sm:$0xff]
          %v629 = vmax.f32 %v613, 1.0
          %v630 = vmax.f32 %v614, 1.0
          %v631 = vmax.f32 %v615, 1.0
          %v632 = vmax.f32 %v616, 1.0
          %v633 = vmax.f32 %v617, 1.0
          %v634 = vmax.f32 %v618, 1.0
          %v635 = vmax.f32 %v619, 1.0
          %v636 = vmax.f32 %v620, 1.0
          %v637 = vmax.f32 %v621, 1.0
          %v638 = vmax.f32 %v622, 1.0
          %v639 = vmax.f32 %v623, 1.0
          %v640 = vmax.f32 %v624, 1.0
          %v641 = vmax.f32 %v625, 1.0
          %v642 = vmax.f32 %v626, 1.0
          %v643 = vmax.f32 %v627, 1.0
          %v644 = vmax.f32 %v628, 1.0
          %v645 = vrsqrt.pop %v629
          %v646 = vrsqrt.pop %v630
          %v647 = vrsqrt.pop %v631
          %v648 = vrsqrt.pop %v632
          %v649 = vrsqrt.pop %v633
          %v650 = vrsqrt.pop %v634
          %v651 = vrsqrt.pop %v635
          %v652 = vrsqrt.pop %v636
          %v653 = vrsqrt.pop %v637
          %v654 = vrsqrt.pop %v638
          %v655 = vrsqrt.pop %v639
          %v656 = vrsqrt.pop %v640
          %v657 = vrsqrt.pop %v641
          %v658 = vrsqrt.pop %v642
          %v659 = vrsqrt.pop %v643
          %v660 = vrsqrt.pop %v644
          %662 = vset.pattern.permute.xlu0 64
          %663 = vperm.xlu0 %662, %v645
          %v664 = vpop.permute.xlu0 %663
          %667 = vset.pattern.permute.xlu0 64
          %668 = vperm.xlu0 %667, %v646
          %v669 = vpop.permute.xlu0 %668
          %672 = vset.pattern.permute.xlu0 64
          %673 = vperm.xlu0 %672, %v647
          %v674 = vpop.permute.xlu0 %673
          %677 = vset.pattern.permute.xlu0 64
          %678 = vperm.xlu0 %677, %v648
          %v679 = vpop.permute.xlu0 %678
          %682 = vset.pattern.permute.xlu0 64
          %683 = vperm.xlu0 %682, %v649
          %v684 = vpop.permute.xlu0 %683
          %687 = vset.pattern.permute.xlu0 64
          %688 = vperm.xlu0 %687, %v650
          %v689 = vpop.permute.xlu0 %688
          %692 = vset.pattern.permute.xlu0 64
          %693 = vperm.xlu0 %692, %v651
          %v694 = vpop.permute.xlu0 %693
          %697 = vset.pattern.permute.xlu0 64
          %698 = vperm.xlu0 %697, %v652
          %v699 = vpop.permute.xlu0 %698
          %702 = vset.pattern.permute.xlu0 64
          %703 = vperm.xlu0 %702, %v653
          %v704 = vpop.permute.xlu0 %703
          %707 = vset.pattern.permute.xlu0 64
          %708 = vperm.xlu0 %707, %v654
          %v709 = vpop.permute.xlu0 %708
          %712 = vset.pattern.permute.xlu0 64
          %713 = vperm.xlu0 %712, %v655
          %v714 = vpop.permute.xlu0 %713
          %717 = vset.pattern.permute.xlu0 64
          %718 = vperm.xlu0 %717, %v656
          %v719 = vpop.permute.xlu0 %718
          %722 = vset.pattern.permute.xlu0 64
          %723 = vperm.xlu0 %722, %v657
          %v724 = vpop.permute.xlu0 %723
          %727 = vset.pattern.permute.xlu0 64
          %728 = vperm.xlu0 %727, %v658
          %v729 = vpop.permute.xlu0 %728
          %732 = vset.pattern.permute.xlu0 64
          %733 = vperm.xlu0 %732, %v659
          %v734 = vpop.permute.xlu0 %733
          %737 = vset.pattern.permute.xlu0 64
          %738 = vperm.xlu0 %737, %v660
          %v739 = vpop.permute.xlu0 %738
          %v741 = vmul.f32 %v613, %v664
          %v742 = vmul.f32 %v614, %v669
          %v743 = vmul.f32 %v615, %v674
          %v744 = vmul.f32 %v616, %v679
          %v745 = vmul.f32 %v617, %v684
          %v746 = vmul.f32 %v618, %v689
          %v747 = vmul.f32 %v619, %v694
          %v748 = vmul.f32 %v620, %v699
          %v749 = vmul.f32 %v621, %v704
          %v750 = vmul.f32 %v622, %v709
          %v751 = vmul.f32 %v623, %v714
          %v752 = vmul.f32 %v624, %v719
          %v753 = vmul.f32 %v625, %v724
          %v754 = vmul.f32 %v626, %v729
          %v755 = vmul.f32 %v627, %v734
          %v756 = vmul.f32 %v628, %v739
          %v757 = vld [vmem:[%s2] sm:$0x1]
          %v759 = vlaneseq
          %v760 = vshrl.u32 %v759, 7
          %v761 = vsub.s32 0, %v760
          %v762 = vrot.slane %v757, %v761
          %v764 = vadd.f32 %v741, %v762
          %v765 = vadd.f32 %v742, %v762
          %v766 = vadd.f32 %v743, %v762
          %v767 = vadd.f32 %v744, %v762
          %v768 = vadd.f32 %v745, %v762
          %v769 = vadd.f32 %v746, %v762
          %v770 = vadd.f32 %v747, %v762
          %v771 = vadd.f32 %v748, %v762
          %v772 = vadd.f32 %v749, %v762
          %v773 = vadd.f32 %v750, %v762
          %v774 = vadd.f32 %v751, %v762
          %v775 = vadd.f32 %v752, %v762
          %v776 = vadd.f32 %v753, %v762
          %v777 = vadd.f32 %v754, %v762
          %v778 = vadd.f32 %v755, %v762
          %v779 = vadd.f32 %v756, %v762
          %780 = vst [vmem:[%s313] sm:$0xff] %v764
          %781 = vst [vmem:[%s313 + $0x8] sm:$0xff] %v765
          %782 = vst [vmem:[%s313 + $0x10] sm:$0xff] %v766
          %783 = vst [vmem:[%s313 + $0x18] sm:$0xff] %v767
          %784 = vst [vmem:[%s313 + $0x20] sm:$0xff] %v768
          %785 = vst [vmem:[%s313 + $0x28] sm:$0xff] %v769
          %786 = vst [vmem:[%s313 + $0x30] sm:$0xff] %v770
          %787 = vst [vmem:[%s313 + $0x38] sm:$0xff] %v771
          %788 = vst [vmem:[%s313 + $0x40] sm:$0xff] %v772
          %789 = vst [vmem:[%s313 + $0x48] sm:$0xff] %v773
          %790 = vst [vmem:[%s313 + $0x50] sm:$0xff] %v774
          %791 = vst [vmem:[%s313 + $0x58] sm:$0xff] %v775
          %792 = vst [vmem:[%s313 + $0x60] sm:$0xff] %v776
          %793 = vst [vmem:[%s313 + $0x68] sm:$0xff] %v777
          %794 = vst [vmem:[%s313 + $0x70] sm:$0xff] %v778
          %795 = vst [vmem:[%s313 + $0x78] sm:$0xff] %v779
        $region81: #{slot_gcn_conv_forward.3} parent=68 // pred_fallthru
          _
        %s796 = smul.u32 16, %s18
        %p797 = scmp.lt.s32.totalorder %s796, 47
        %s798 = scalar_select %p797, %s796, 47
        %s799 = smul.addr %s798, 8
        %s800 = scalar_lea.vmem %s3, %s799
        // Predicated region
        $region82: #{slot_gcn_conv_forward.3} parent=68 // pred_check
          %p801 = pneg %p119
        $region83: #{slot_gcn_conv_forward.3} parent=68 // pred_check_branch
          %803 = sbr.rel (%p801) target = $region85
        $region84: #{slot_gcn_conv_forward.3} parent=68 // pred_region
          %s804 = smul.u32 16, %s18
        $region85: #{slot_gcn_conv_forward.3} parent=68 // pred_fallthru
          _
      $region69: #{slot_gcn_conv_forward.3} parent=5 // pred_fallthru
        _
      %p805 = scmp.le.s32.totalorder 2, %s9
      // Predicated region
      $region86: #{slot_gcn_conv_forward.3} parent=5 // pred_check
        %p806 = pneg %p805
      $region87: #{slot_gcn_conv_forward.3} parent=5 // pred_check_branch
        %808 = sbr.rel (%p806) target = $region89
      $region88: #{slot_gcn_conv_forward.3} parent=5 // pred_region
        %s809 = ssub.s32 %s9, 2
        // Predicated region
        $region90: #{slot_gcn_conv_forward.3} parent=88 // pred_check
          %p810 = pneg %p125
        $region91: #{slot_gcn_conv_forward.3} parent=88 // pred_check_branch
          %812 = sbr.rel (%p810) target = $region93
        $region92: #{slot_gcn_conv_forward.3} parent=88 // pred_region
          %s813 = smul.u32 16, %s20
          %p814 = scmp.lt.s32.totalorder %s813, 47
          %s815 = scalar_select %p814, %s813, 47
          %s816 = smul.addr %s815, 8
          %s817 = scalar_lea.vmem %s3, %s816
        $region93: #{slot_gcn_conv_forward.3} parent=88 // pred_fallthru
          _
      $region89: #{slot_gcn_conv_forward.3} parent=5 // pred_fallthru
        _
    $region6: #{slot_gcn_conv_forward.3} parent=1 // loop_footer
      %s13 = sadd.s32 1, %s9
    $region7: #{slot_gcn_conv_forward.3} parent=1 // loop_footer_branch
      %8 = sbr.rel target = $region3
    $region8: #{slot_gcn_conv_forward.3} parent=1 // loop_exit
      _

</llo_original>
